<compile_context>
chip_gen: v5e
topology: v5e:2x2
jax: 0.10.0
libtpu: 0.0.40
codegen_flags: <defaults>
</compile_context>

<pallas_src>
import numpy as np
import jax
import jax.numpy as jnp
from jax.experimental import pallas as pl
from jax.experimental.pallas import tpu as pltpu

SHIFT = 3
SHIFT2 = 1
POOL_K = 9
CROP = max(1 << (SHIFT - 1), 1 << (SHIFT2 - 1))   # = 4 (front elements dropped)


# ----------------------------------------------------------------------------
# Host-side index bookkeeping (all O(W), computed once per shape)
# ----------------------------------------------------------------------------
def _nearest_idx(n_in, n_out):
    """PyTorch nn.Upsample(mode='nearest') source index: floor(t*in/out), clamped."""
    scale = np.float64(n_in) / np.float64(n_out)
    idx = np.floor(np.arange(n_out, dtype=np.float64) * scale).astype(np.int64)
    return np.minimum(idx, n_in - 1)


def _stride1_segments(W):
    """Contiguous column regions where the kernel-9/stride-1 upsample shift is constant."""
    n1 = W - (POOL_K - 1)
    idx = _nearest_idx(n1, W)
    k = np.arange(W) - idx                    # shift per output column (non-decreasing)
    segs = []
    for kv in sorted(set(int(v) for v in k)):
        cols = np.nonzero(k == kv)[0]
        lo, hi = int(cols[0]), int(cols[-1]) + 1
        assert hi - lo == cols.size           # contiguity (k is monotone)
        segs.append((kv, lo, hi))
    assert sum(hi - lo for _, lo, hi in segs) == W
    return segs


def _stride9_shift_map(W):
    """Per-column shift for the kernel-9/stride-9 branch: out[t] = win[t - k2[t]]."""
    n2 = W // POOL_K
    idx = _nearest_idx(n2, W)
    j = POOL_K * idx                          # source index in stride-1 window space
    k2 = (np.arange(W) - j).astype(np.int32)
    assert int(k2.min()) >= 0
    return k2, sorted(set(int(v) for v in k2))


# ----------------------------------------------------------------------------
# Kernel
# ----------------------------------------------------------------------------
def _win9(v, op):
    """9-tap sliding window reduce along lanes via the doubling trick (4 combines)."""
    n = v.shape[-1]
    a = op(v[..., : n - 1], v[..., 1:])           # 2-window
    b = op(a[..., : n - 3], a[..., 2: n - 1])     # 4-window
    c = op(b[..., : n - 7], b[..., 4: n - 3])     # 8-window
    return op(c[..., : n - 8], v[..., 8:])        # 9-window, width n-8


def _make_kernel(W, bt, seg1, k2_vals, kmax, batch_major):
    inv_k = np.float32(1.0 / POOL_K)

    def kernel(k2_ref, x_ref, o_ref):
        x = x_ref[...]                                         # (bt, L)
        L = x.shape[-1]
        base = x[:, CROP:]                                     # x[t+4]
        s1 = x[:, CROP - 1: L - 1]                             # x[t+3]
        s2 = x[:, CROP - 2: L - 2]                             # x[t+2]
        s4 = x[:, : L - CROP]                                  # x[t]
        # Derivative stack, channel-leading: lag1, lag2, lag4, 2nd derivative.
        D = jnp.stack([base - s1, base - s2, base - s4,
                       base - 2.0 * s1 + s2], axis=0)          # (4, bt, L-4)

        # Stage-1 AvgPool1d(9, stride=1)
        P = _win9(D, jnp.add) * inv_k                          # (4, bt, W)

        # MultiScale window reductions (avg & max share one leading-stacked pass).
        ws = _win9(P, jnp.add) * inv_k                         # (4, bt, n1) sliding mean
        wm = _win9(P, jnp.maximum)                             # (4, bt, n1) sliding max
        pair = jnp.concatenate([ws, wm], axis=0)               # (8, bt, n1)

        # kernel-9 / stride-1 pools + nearest upsample: per-region shifted slices.
        up1 = jnp.concatenate(
            [pair[..., lo - k: hi - k] for (k, lo, hi) in seg1], axis=-1)   # (8,bt,W)

        # kernel-9 / stride-9 pools + nearest upsample:
        #   out[..., t] = pair[..., t - k2(t)]  -> select among shifted views.
        zl = jnp.zeros(pair.shape[:-1] + (kmax,), jnp.float32)
        zr = jnp.zeros(pair.shape[:-1] + (POOL_K - 1,), jnp.float32)
        padded = jnp.concatenate([zl, pair, zr], axis=-1)      # (8, bt, kmax+n1+8)
        k2map = k2_ref[...]                                    # (1, W) int32
        k0 = k2_vals[0]
        up2 = padded[..., kmax - k0: kmax - k0 + W]
        for k in k2_vals[1:]:
            view = padded[..., kmax - k: kmax - k + W]
            up2 = jnp.where(k2map == k, view, up2)             # (8, bt, W)

        if batch_major:
            # (16, bt, W) channel-major stack -> (bt, 16, W) so the wrapper needs
            # no transpose / HBM round trip.
            full = jnp.concatenate(
                [up1[:4] + P, up2[:4] + P, up1[4:] + P, up2[4:] + P], axis=0)
            swap = getattr(pltpu, "einshape", None)
            if swap is not None:
                o_ref[...] = swap("cbw->bcw", full)
            else:
                o_ref[...] = jnp.transpose(full, (1, 0, 2))
        else:
            # Channel-major output; store every branch as soon as it is ready.
            o_ref[0:4] = up1[:4] + P        # AvgPool(9,1)
            o_ref[4:8] = up2[:4] + P        # AvgPool(9,9)
            o_ref[8:12] = up1[4:] + P       # MaxPool(9,1)
            o_ref[12:16] = up2[4:] + P      # MaxPool(9,9)

    return kernel


# ----------------------------------------------------------------------------
# Wrapper
# ----------------------------------------------------------------------------
def _pick_bt(B, W):
    """Batch-tile size: multiple of 8, bounded so live f32 intermediates fit the
    default scoped VMEM on v5e/v7x, and small enough to give v7x >=2 grid steps."""
    bt = max(8, min(64, (32768 // max(W, 1)) // 8 * 8))
    bt = min(bt, ((B + 7) // 8) * 8)
    if B > 8 and -(-B // bt) < 2:
        bt = max(8, ((B + 1) // 2 + 7) // 8 * 8)
    T = -(-B // bt)
    bt = max(8, ((-(-B // T)) + 7) // 8 * 8)      # shrink to minimize batch padding
    return bt, -(-B // bt)


def derive_layer_forward(x, batch_major_store=True):
    """x: [B, L] float -> [B, 16, L-12] float32 (DeriveLayer.forward, defaults)."""
    B, L = x.shape
    W = L - CROP - (POOL_K - 1)
    assert W >= POOL_K, "max_len too small for poolKernel"

    seg1 = _stride1_segments(W)
    k2, k2_vals = _stride9_shift_map(W)
    kmax = max(k2_vals)
    k2map = jnp.asarray(k2[None, :], jnp.int32)                # (1, W)

    bt, T = _pick_bt(B, W)
    Bp = T * bt
    x32 = x.astype(jnp.float32)
    if Bp != B:
        x32 = jnp.pad(x32, ((0, Bp - B), (0, 0)))

    kernel = _make_kernel(W, bt, seg1, k2_vals, kmax, batch_major_store)

    if batch_major_store:
        out_shape = jax.ShapeDtypeStruct((Bp, 16, W), jnp.float32)
        out_spec = pl.BlockSpec((bt, 16, W), lambda t: (t, 0, 0))
    else:
        out_shape = jax.ShapeDtypeStruct((16, Bp, W), jnp.float32)
        out_spec = pl.BlockSpec((16, bt, W), lambda t: (0, t, 0))

    out = pl.pallas_call(
        kernel,
        out_shape=out_shape,
        grid_spec=pltpu.PrefetchScalarGridSpec(
            num_scalar_prefetch=0,
            grid=(T,),
            in_specs=[
                pl.BlockSpec((1, W), lambda t: (0, 0)),        # stride-9 shift map
                pl.BlockSpec((bt, L), lambda t: (t, 0)),       # batch tile of x
            ],
            out_specs=out_spec,
        ),
        compiler_params=pltpu.CompilerParams(
            dimension_semantics=("parallel",)),                # shard tiles on v7x
    )(k2map, x32)

    if batch_major_store:
        return out[:B]                                         # no transpose needed
    return jnp.transpose(out, (1, 0, 2))[:B]


# ----------------------------------------------------------------------------
# Pure NumPy reference of DeriveLayer.forward (defaults) for self-verification
# ----------------------------------------------------------------------------
def _reference(x):
    x = np.asarray(x, np.float32)
    B, L = x.shape
    W = L - CROP - (POOL_K - 1)
    r0 = x[:, 4:] - x[:, 3:-1]
    r1 = x[:, 4:] - x[:, 2:-2]
    r2 = x[:, 4:] - x[:, :-4]
    r3 = x[:, 4:] - 2.0 * x[:, 3:-1] + x[:, 2:-2]
    res = np.stack([r0, r1, r2, r3], axis=1)                                  # (B,4,L-4)
    p = np.mean(np.stack([res[:, :, k:k + W] for k in range(POOL_K)], 0), 0)  # (B,4,W)
    n1 = W - POOL_K + 1
    n2 = W // POOL_K
    w1 = np.stack([p[:, :, k:k + n1] for k in range(POOL_K)], 0)
    a1, m1 = w1.mean(0), w1.max(0)
    w2 = p[:, :, :POOL_K * n2].reshape(B, 4, n2, POOL_K)
    a2, m2 = w2.mean(-1), w2.max(-1)
    i1 = _nearest_idx(n1, W)
    i2 = _nearest_idx(n2, W)
    return np.concatenate(
        [a1[:, :, i1] + p, a2[:, :, i2] + p, m1[:, :, i1] + p, m2[:, :, i2] + p],
        axis=1)


if __name__ == "__main__":
    B, L = 2, 64                     # max_len = 64  ->  output (2, 16, 52)
    key = jax.random.PRNGKey(0)
    x = jax.random.normal(key, (B, L), dtype=jnp.float32)
    ref = _reference(np.asarray(x))

    out = None
    try:
        o = jax.block_until_ready(derive_layer_forward(x, batch_major_store=True))
        np.testing.assert_allclose(np.asarray(o), ref, rtol=1e-3, atol=1e-3)
        out = np.asarray(o)
    except Exception:
        out = None
    if out is None:
        # TODO(synk): fallback keeps the kernel channel-major and reorders in XLA if
        # the in-kernel (channel, batch) sublane swap does not lower on this toolchain.
        o = jax.block_until_ready(derive_layer_forward(x, batch_major_store=False))
        np.testing.assert_allclose(np.asarray(o), ref, rtol=1e-3, atol=1e-3)
        out = np.asarray(o)

    assert out.shape == ref.shape, (out.shape, ref.shape)
    print("KERNEL_OK")
</pallas_src>

<mosaic_0001>
module attributes {stable_mosaic.version = 11 : i64} {
  func.func @kernel(%arg0: i32, %arg1: memref<1x52xi32, #tpu.memory_space<vmem>>, %arg2: memref<8x64xf32, #tpu.memory_space<vmem>>, %arg3: memref<8x16x52xf32, #tpu.memory_space<vmem>>) attributes {dimension_semantics = [#tpu.dimension_semantics<parallel>], iteration_bounds = array<i64: 1>, scalar_prefetch = 0 : i64, scratch_operands = 0 : i64, tpu.core_type = #tpu.core_type<tc>, window_params = [{pipeline_mode = #tpu.pipeline_mode<synchronous>, transform_indices = @transform_0, window_bounds = array<i64: 1, 52>}, {transform_indices = @transform_1, window_bounds = array<i64: 8, 64>}, {transform_indices = @transform_2, window_bounds = array<i64: 8, 16, 52>}]} {
    %c0 = arith.constant 0 : index
    %c0_0 = arith.constant 0 : index
    %0 = vector.load %arg2[%c0, %c0_0] : memref<8x64xf32, #tpu.memory_space<vmem>>, vector<8x64xf32>
    %1 = vector.extract_strided_slice %0 {offsets = [0, 4], sizes = [8, 60], strides = [1, 1]} : vector<8x64xf32> to vector<8x60xf32>
    %2 = vector.extract_strided_slice %0 {offsets = [0, 3], sizes = [8, 60], strides = [1, 1]} : vector<8x64xf32> to vector<8x60xf32>
    %3 = vector.extract_strided_slice %0 {offsets = [0, 2], sizes = [8, 60], strides = [1, 1]} : vector<8x64xf32> to vector<8x60xf32>
    %4 = vector.extract_strided_slice %0 {offsets = [0, 0], sizes = [8, 60], strides = [1, 1]} : vector<8x64xf32> to vector<8x60xf32>
    %5 = arith.subf %1, %2 : vector<8x60xf32>
    %6 = arith.subf %1, %3 : vector<8x60xf32>
    %7 = arith.subf %1, %4 : vector<8x60xf32>
    %cst = arith.constant 2.000000e+00 : f32
    %8 = vector.broadcast %cst : f32 to vector<8x60xf32>
    %9 = arith.mulf %8, %2 : vector<8x60xf32>
    %10 = arith.subf %1, %9 : vector<8x60xf32>
    %11 = arith.addf %10, %3 : vector<8x60xf32>
    %12 = vector.shape_cast %5 : vector<8x60xf32> to vector<1x8x60xf32>
    %13 = vector.shape_cast %6 : vector<8x60xf32> to vector<1x8x60xf32>
    %14 = vector.shape_cast %7 : vector<8x60xf32> to vector<1x8x60xf32>
    %15 = vector.shape_cast %11 : vector<8x60xf32> to vector<1x8x60xf32>
    %16 = tpu.concatenate %12, %13, %14, %15 in 0 : vector<1x8x60xf32>, vector<1x8x60xf32>, vector<1x8x60xf32>, vector<1x8x60xf32> -> vector<4x8x60xf32>
    %17 = vector.extract_strided_slice %16 {offsets = [0, 0, 0], sizes = [4, 8, 59], strides = [1, 1, 1]} : vector<4x8x60xf32> to vector<4x8x59xf32>
    %18 = vector.extract_strided_slice %16 {offsets = [0, 0, 1], sizes = [4, 8, 59], strides = [1, 1, 1]} : vector<4x8x60xf32> to vector<4x8x59xf32>
    %19 = arith.addf %17, %18 : vector<4x8x59xf32>
    %20 = vector.extract_strided_slice %19 {offsets = [0, 0, 0], sizes = [4, 8, 57], strides = [1, 1, 1]} : vector<4x8x59xf32> to vector<4x8x57xf32>
    %21 = vector.extract_strided_slice %19 {offsets = [0, 0, 2], sizes = [4, 8, 57], strides = [1, 1, 1]} : vector<4x8x59xf32> to vector<4x8x57xf32>
    %22 = arith.addf %20, %21 : vector<4x8x57xf32>
    %23 = vector.extract_strided_slice %22 {offsets = [0, 0, 0], sizes = [4, 8, 53], strides = [1, 1, 1]} : vector<4x8x57xf32> to vector<4x8x53xf32>
    %24 = vector.extract_strided_slice %22 {offsets = [0, 0, 4], sizes = [4, 8, 53], strides = [1, 1, 1]} : vector<4x8x57xf32> to vector<4x8x53xf32>
    %25 = arith.addf %23, %24 : vector<4x8x53xf32>
    %26 = vector.extract_strided_slice %25 {offsets = [0, 0, 0], sizes = [4, 8, 52], strides = [1, 1, 1]} : vector<4x8x53xf32> to vector<4x8x52xf32>
    %27 = vector.extract_strided_slice %16 {offsets = [0, 0, 8], sizes = [4, 8, 52], strides = [1, 1, 1]} : vector<4x8x60xf32> to vector<4x8x52xf32>
    %28 = arith.addf %26, %27 : vector<4x8x52xf32>
    %cst_1 = arith.constant 0.111111112 : f32
    %29 = vector.broadcast %cst_1 : f32 to vector<4x8x52xf32>
    %30 = arith.mulf %28, %29 : vector<4x8x52xf32>
    %31 = vector.extract_strided_slice %30 {offsets = [0, 0, 0], sizes = [4, 8, 51], strides = [1, 1, 1]} : vector<4x8x52xf32> to vector<4x8x51xf32>
    %32 = vector.extract_strided_slice %30 {offsets = [0, 0, 1], sizes = [4, 8, 51], strides = [1, 1, 1]} : vector<4x8x52xf32> to vector<4x8x51xf32>
    %33 = arith.addf %31, %32 : vector<4x8x51xf32>
    %34 = vector.extract_strided_slice %33 {offsets = [0, 0, 0], sizes = [4, 8, 49], strides = [1, 1, 1]} : vector<4x8x51xf32> to vector<4x8x49xf32>
    %35 = vector.extract_strided_slice %33 {offsets = [0, 0, 2], sizes = [4, 8, 49], strides = [1, 1, 1]} : vector<4x8x51xf32> to vector<4x8x49xf32>
    %36 = arith.addf %34, %35 : vector<4x8x49xf32>
    %37 = vector.extract_strided_slice %36 {offsets = [0, 0, 0], sizes = [4, 8, 45], strides = [1, 1, 1]} : vector<4x8x49xf32> to vector<4x8x45xf32>
    %38 = vector.extract_strided_slice %36 {offsets = [0, 0, 4], sizes = [4, 8, 45], strides = [1, 1, 1]} : vector<4x8x49xf32> to vector<4x8x45xf32>
    %39 = arith.addf %37, %38 : vector<4x8x45xf32>
    %40 = vector.extract_strided_slice %39 {offsets = [0, 0, 0], sizes = [4, 8, 44], strides = [1, 1, 1]} : vector<4x8x45xf32> to vector<4x8x44xf32>
    %41 = vector.extract_strided_slice %30 {offsets = [0, 0, 8], sizes = [4, 8, 44], strides = [1, 1, 1]} : vector<4x8x52xf32> to vector<4x8x44xf32>
    %42 = arith.addf %40, %41 : vector<4x8x44xf32>
    %cst_2 = arith.constant 0.111111112 : f32
    %43 = vector.broadcast %cst_2 : f32 to vector<4x8x44xf32>
    %44 = arith.mulf %42, %43 : vector<4x8x44xf32>
    %45 = vector.extract_strided_slice %30 {offsets = [0, 0, 0], sizes = [4, 8, 51], strides = [1, 1, 1]} : vector<4x8x52xf32> to vector<4x8x51xf32>
    %46 = vector.extract_strided_slice %30 {offsets = [0, 0, 1], sizes = [4, 8, 51], strides = [1, 1, 1]} : vector<4x8x52xf32> to vector<4x8x51xf32>
    %47 = arith.maximumf %45, %46 : vector<4x8x51xf32>
    %48 = vector.extract_strided_slice %47 {offsets = [0, 0, 0], sizes = [4, 8, 49], strides = [1, 1, 1]} : vector<4x8x51xf32> to vector<4x8x49xf32>
    %49 = vector.extract_strided_slice %47 {offsets = [0, 0, 2], sizes = [4, 8, 49], strides = [1, 1, 1]} : vector<4x8x51xf32> to vector<4x8x49xf32>
    %50 = arith.maximumf %48, %49 : vector<4x8x49xf32>
    %51 = vector.extract_strided_slice %50 {offsets = [0, 0, 0], sizes = [4, 8, 45], strides = [1, 1, 1]} : vector<4x8x49xf32> to vector<4x8x45xf32>
    %52 = vector.extract_strided_slice %50 {offsets = [0, 0, 4], sizes = [4, 8, 45], strides = [1, 1, 1]} : vector<4x8x49xf32> to vector<4x8x45xf32>
    %53 = arith.maximumf %51, %52 : vector<4x8x45xf32>
    %54 = vector.extract_strided_slice %53 {offsets = [0, 0, 0], sizes = [4, 8, 44], strides = [1, 1, 1]} : vector<4x8x45xf32> to vector<4x8x44xf32>
    %55 = vector.extract_strided_slice %30 {offsets = [0, 0, 8], sizes = [4, 8, 44], strides = [1, 1, 1]} : vector<4x8x52xf32> to vector<4x8x44xf32>
    %56 = arith.maximumf %54, %55 : vector<4x8x44xf32>
    %57 = tpu.concatenate %44, %56 in 0 : vector<4x8x44xf32>, vector<4x8x44xf32> -> vector<8x8x44xf32>
    %58 = vector.extract_strided_slice %57 {offsets = [0, 0, 0], sizes = [8, 8, 1], strides = [1, 1, 1]} : vector<8x8x44xf32> to vector<8x8x1xf32>
    %59 = vector.extract_strided_slice %57 {offsets = [0, 0, 0], sizes = [8, 8, 6], strides = [1, 1, 1]} : vector<8x8x44xf32> to vector<8x8x6xf32>
    %60 = vector.extract_strided_slice %57 {offsets = [0, 0, 5], sizes = [8, 8, 7], strides = [1, 1, 1]} : vector<8x8x44xf32> to vector<8x8x7xf32>
    %61 = vector.extract_strided_slice %57 {offsets = [0, 0, 11], sizes = [8, 8, 6], strides = [1, 1, 1]} : vector<8x8x44xf32> to vector<8x8x6xf32>
    %62 = vector.extract_strided_slice %57 {offsets = [0, 0, 16], sizes = [8, 8, 7], strides = [1, 1, 1]} : vector<8x8x44xf32> to vector<8x8x7xf32>
    %63 = vector.extract_strided_slice %57 {offsets = [0, 0, 22], sizes = [8, 8, 6], strides = [1, 1, 1]} : vector<8x8x44xf32> to vector<8x8x6xf32>
    %64 = vector.extract_strided_slice %57 {offsets = [0, 0, 27], sizes = [8, 8, 7], strides = [1, 1, 1]} : vector<8x8x44xf32> to vector<8x8x7xf32>
    %65 = vector.extract_strided_slice %57 {offsets = [0, 0, 33], sizes = [8, 8, 6], strides = [1, 1, 1]} : vector<8x8x44xf32> to vector<8x8x6xf32>
    %66 = vector.extract_strided_slice %57 {offsets = [0, 0, 38], sizes = [8, 8, 6], strides = [1, 1, 1]} : vector<8x8x44xf32> to vector<8x8x6xf32>
    %67 = tpu.concatenate %58, %59, %60, %61, %62, %63, %64, %65, %66 in 2 : vector<8x8x1xf32>, vector<8x8x6xf32>, vector<8x8x7xf32>, vector<8x8x6xf32>, vector<8x8x7xf32>, vector<8x8x6xf32>, vector<8x8x7xf32>, vector<8x8x6xf32>, vector<8x8x6xf32> -> vector<8x8x52xf32>
    %cst_3 = arith.constant 0.000000e+00 : f32
    %68 = vector.broadcast %cst_3 : f32 to vector<8x8x15xf32>
    %cst_4 = arith.constant 0.000000e+00 : f32
    %69 = vector.broadcast %cst_4 : f32 to vector<8x8x8xf32>
    %70 = tpu.concatenate %68, %57, %69 in 2 : vector<8x8x15xf32>, vector<8x8x44xf32>, vector<8x8x8xf32> -> vector<8x8x67xf32>
    %c0_5 = arith.constant 0 : index
    %c0_6 = arith.constant 0 : index
    %71 = vector.load %arg1[%c0_5, %c0_6] : memref<1x52xi32, #tpu.memory_space<vmem>>, vector<1x52xi32>
    %72 = vector.extract_strided_slice %70 {offsets = [0, 0, 15], sizes = [8, 8, 52], strides = [1, 1, 1]} : vector<8x8x67xf32> to vector<8x8x52xf32>
    %73 = vector.extract_strided_slice %70 {offsets = [0, 0, 14], sizes = [8, 8, 52], strides = [1, 1, 1]} : vector<8x8x67xf32> to vector<8x8x52xf32>
    %c1_i32 = arith.constant 1 : i32
    %74 = vector.broadcast %c1_i32 : i32 to vector<1x52xi32>
    %75 = arith.cmpi eq, %71, %74 : vector<1x52xi32>
    %76 = vector.shape_cast %75 : vector<1x52xi1> to vector<1x1x52xi1>
    %77 = vector.broadcast %76 : vector<1x1x52xi1> to vector<8x8x52xi1>
    %78 = arith.select %77, %73, %72 : vector<8x8x52xi1>, vector<8x8x52xf32>
    %79 = vector.extract_strided_slice %70 {offsets = [0, 0, 13], sizes = [8, 8, 52], strides = [1, 1, 1]} : vector<8x8x67xf32> to vector<8x8x52xf32>
    %c2_i32 = arith.constant 2 : i32
    %80 = vector.broadcast %c2_i32 : i32 to vector<1x52xi32>
    %81 = arith.cmpi eq, %71, %80 : vector<1x52xi32>
    %82 = vector.shape_cast %81 : vector<1x52xi1> to vector<1x1x52xi1>
    %83 = vector.broadcast %82 : vector<1x1x52xi1> to vector<8x8x52xi1>
    %84 = arith.select %83, %79, %78 : vector<8x8x52xi1>, vector<8x8x52xf32>
    %85 = vector.extract_strided_slice %70 {offsets = [0, 0, 12], sizes = [8, 8, 52], strides = [1, 1, 1]} : vector<8x8x67xf32> to vector<8x8x52xf32>
    %c3_i32 = arith.constant 3 : i32
    %86 = vector.broadcast %c3_i32 : i32 to vector<1x52xi32>
    %87 = arith.cmpi eq, %71, %86 : vector<1x52xi32>
    %88 = vector.shape_cast %87 : vector<1x52xi1> to vector<1x1x52xi1>
    %89 = vector.broadcast %88 : vector<1x1x52xi1> to vector<8x8x52xi1>
    %90 = arith.select %89, %85, %84 : vector<8x8x52xi1>, vector<8x8x52xf32>
    %91 = vector.extract_strided_slice %70 {offsets = [0, 0, 11], sizes = [8, 8, 52], strides = [1, 1, 1]} : vector<8x8x67xf32> to vector<8x8x52xf32>
    %c4_i32 = arith.constant 4 : i32
    %92 = vector.broadcast %c4_i32 : i32 to vector<1x52xi32>
    %93 = arith.cmpi eq, %71, %92 : vector<1x52xi32>
    %94 = vector.shape_cast %93 : vector<1x52xi1> to vector<1x1x52xi1>
    %95 = vector.broadcast %94 : vector<1x1x52xi1> to vector<8x8x52xi1>
    %96 = arith.select %95, %91, %90 : vector<8x8x52xi1>, vector<8x8x52xf32>
    %97 = vector.extract_strided_slice %70 {offsets = [0, 0, 10], sizes = [8, 8, 52], strides = [1, 1, 1]} : vector<8x8x67xf32> to vector<8x8x52xf32>
    %c5_i32 = arith.constant 5 : i32
    %98 = vector.broadcast %c5_i32 : i32 to vector<1x52xi32>
    %99 = arith.cmpi eq, %71, %98 : vector<1x52xi32>
    %100 = vector.shape_cast %99 : vector<1x52xi1> to vector<1x1x52xi1>
    %101 = vector.broadcast %100 : vector<1x1x52xi1> to vector<8x8x52xi1>
    %102 = arith.select %101, %97, %96 : vector<8x8x52xi1>, vector<8x8x52xf32>
    %103 = vector.extract_strided_slice %70 {offsets = [0, 0, 9], sizes = [8, 8, 52], strides = [1, 1, 1]} : vector<8x8x67xf32> to vector<8x8x52xf32>
    %c6_i32 = arith.constant 6 : i32
    %104 = vector.broadcast %c6_i32 : i32 to vector<1x52xi32>
    %105 = arith.cmpi eq, %71, %104 : vector<1x52xi32>
    %106 = vector.shape_cast %105 : vector<1x52xi1> to vector<1x1x52xi1>
    %107 = vector.broadcast %106 : vector<1x1x52xi1> to vector<8x8x52xi1>
    %108 = arith.select %107, %103, %102 : vector<8x8x52xi1>, vector<8x8x52xf32>
    %109 = vector.extract_strided_slice %70 {offsets = [0, 0, 8], sizes = [8, 8, 52], strides = [1, 1, 1]} : vector<8x8x67xf32> to vector<8x8x52xf32>
    %c7_i32 = arith.constant 7 : i32
    %110 = vector.broadcast %c7_i32 : i32 to vector<1x52xi32>
    %111 = arith.cmpi eq, %71, %110 : vector<1x52xi32>
    %112 = vector.shape_cast %111 : vector<1x52xi1> to vector<1x1x52xi1>
    %113 = vector.broadcast %112 : vector<1x1x52xi1> to vector<8x8x52xi1>
    %114 = arith.select %113, %109, %108 : vector<8x8x52xi1>, vector<8x8x52xf32>
    %115 = vector.extract_strided_slice %70 {offsets = [0, 0, 7], sizes = [8, 8, 52], strides = [1, 1, 1]} : vector<8x8x67xf32> to vector<8x8x52xf32>
    %c8_i32 = arith.constant 8 : i32
    %116 = vector.broadcast %c8_i32 : i32 to vector<1x52xi32>
    %117 = arith.cmpi eq, %71, %116 : vector<1x52xi32>
    %118 = vector.shape_cast %117 : vector<1x52xi1> to vector<1x1x52xi1>
    %119 = vector.broadcast %118 : vector<1x1x52xi1> to vector<8x8x52xi1>
    %120 = arith.select %119, %115, %114 : vector<8x8x52xi1>, vector<8x8x52xf32>
    %121 = vector.extract_strided_slice %70 {offsets = [0, 0, 6], sizes = [8, 8, 52], strides = [1, 1, 1]} : vector<8x8x67xf32> to vector<8x8x52xf32>
    %c9_i32 = arith.constant 9 : i32
    %122 = vector.broadcast %c9_i32 : i32 to vector<1x52xi32>
    %123 = arith.cmpi eq, %71, %122 : vector<1x52xi32>
    %124 = vector.shape_cast %123 : vector<1x52xi1> to vector<1x1x52xi1>
    %125 = vector.broadcast %124 : vector<1x1x52xi1> to vector<8x8x52xi1>
    %126 = arith.select %125, %121, %120 : vector<8x8x52xi1>, vector<8x8x52xf32>
    %127 = vector.extract_strided_slice %70 {offsets = [0, 0, 5], sizes = [8, 8, 52], strides = [1, 1, 1]} : vector<8x8x67xf32> to vector<8x8x52xf32>
    %c10_i32 = arith.constant 10 : i32
    %128 = vector.broadcast %c10_i32 : i32 to vector<1x52xi32>
    %129 = arith.cmpi eq, %71, %128 : vector<1x52xi32>
    %130 = vector.shape_cast %129 : vector<1x52xi1> to vector<1x1x52xi1>
    %131 = vector.broadcast %130 : vector<1x1x52xi1> to vector<8x8x52xi1>
    %132 = arith.select %131, %127, %126 : vector<8x8x52xi1>, vector<8x8x52xf32>
    %133 = vector.extract_strided_slice %70 {offsets = [0, 0, 4], sizes = [8, 8, 52], strides = [1, 1, 1]} : vector<8x8x67xf32> to vector<8x8x52xf32>
    %c11_i32 = arith.constant 11 : i32
    %134 = vector.broadcast %c11_i32 : i32 to vector<1x52xi32>
    %135 = arith.cmpi eq, %71, %134 : vector<1x52xi32>
    %136 = vector.shape_cast %135 : vector<1x52xi1> to vector<1x1x52xi1>
    %137 = vector.broadcast %136 : vector<1x1x52xi1> to vector<8x8x52xi1>
    %138 = arith.select %137, %133, %132 : vector<8x8x52xi1>, vector<8x8x52xf32>
    %139 = vector.extract_strided_slice %70 {offsets = [0, 0, 3], sizes = [8, 8, 52], strides = [1, 1, 1]} : vector<8x8x67xf32> to vector<8x8x52xf32>
    %c12_i32 = arith.constant 12 : i32
    %140 = vector.broadcast %c12_i32 : i32 to vector<1x52xi32>
    %141 = arith.cmpi eq, %71, %140 : vector<1x52xi32>
    %142 = vector.shape_cast %141 : vector<1x52xi1> to vector<1x1x52xi1>
    %143 = vector.broadcast %142 : vector<1x1x52xi1> to vector<8x8x52xi1>
    %144 = arith.select %143, %139, %138 : vector<8x8x52xi1>, vector<8x8x52xf32>
    %145 = vector.extract_strided_slice %70 {offsets = [0, 0, 2], sizes = [8, 8, 52], strides = [1, 1, 1]} : vector<8x8x67xf32> to vector<8x8x52xf32>
    %c13_i32 = arith.constant 13 : i32
    %146 = vector.broadcast %c13_i32 : i32 to vector<1x52xi32>
    %147 = arith.cmpi eq, %71, %146 : vector<1x52xi32>
    %148 = vector.shape_cast %147 : vector<1x52xi1> to vector<1x1x52xi1>
    %149 = vector.broadcast %148 : vector<1x1x52xi1> to vector<8x8x52xi1>
    %150 = arith.select %149, %145, %144 : vector<8x8x52xi1>, vector<8x8x52xf32>
    %151 = vector.extract_strided_slice %70 {offsets = [0, 0, 1], sizes = [8, 8, 52], strides = [1, 1, 1]} : vector<8x8x67xf32> to vector<8x8x52xf32>
    %c14_i32 = arith.constant 14 : i32
    %152 = vector.broadcast %c14_i32 : i32 to vector<1x52xi32>
    %153 = arith.cmpi eq, %71, %152 : vector<1x52xi32>
    %154 = vector.shape_cast %153 : vector<1x52xi1> to vector<1x1x52xi1>
    %155 = vector.broadcast %154 : vector<1x1x52xi1> to vector<8x8x52xi1>
    %156 = arith.select %155, %151, %150 : vector<8x8x52xi1>, vector<8x8x52xf32>
    %157 = vector.extract_strided_slice %70 {offsets = [0, 0, 0], sizes = [8, 8, 52], strides = [1, 1, 1]} : vector<8x8x67xf32> to vector<8x8x52xf32>
    %c15_i32 = arith.constant 15 : i32
    %158 = vector.broadcast %c15_i32 : i32 to vector<1x52xi32>
    %159 = arith.cmpi eq, %71, %158 : vector<1x52xi32>
    %160 = vector.shape_cast %159 : vector<1x52xi1> to vector<1x1x52xi1>
    %161 = vector.broadcast %160 : vector<1x1x52xi1> to vector<8x8x52xi1>
    %162 = arith.select %161, %157, %156 : vector<8x8x52xi1>, vector<8x8x52xf32>
    %163 = vector.extract_strided_slice %67 {offsets = [0, 0, 0], sizes = [4, 8, 52], strides = [1, 1, 1]} : vector<8x8x52xf32> to vector<4x8x52xf32>
    %164 = arith.addf %163, %30 : vector<4x8x52xf32>
    %165 = vector.extract_strided_slice %162 {offsets = [0, 0, 0], sizes = [4, 8, 52], strides = [1, 1, 1]} : vector<8x8x52xf32> to vector<4x8x52xf32>
    %166 = arith.addf %165, %30 : vector<4x8x52xf32>
    %167 = vector.extract_strided_slice %67 {offsets = [4, 0, 0], sizes = [4, 8, 52], strides = [1, 1, 1]} : vector<8x8x52xf32> to vector<4x8x52xf32>
    %168 = arith.addf %167, %30 : vector<4x8x52xf32>
    %169 = vector.extract_strided_slice %162 {offsets = [4, 0, 0], sizes = [4, 8, 52], strides = [1, 1, 1]} : vector<8x8x52xf32> to vector<4x8x52xf32>
    %170 = arith.addf %169, %30 : vector<4x8x52xf32>
    %171 = tpu.concatenate %164, %166, %168, %170 in 0 : vector<4x8x52xf32>, vector<4x8x52xf32>, vector<4x8x52xf32>, vector<4x8x52xf32> -> vector<16x8x52xf32>
    %172 = tpu.transpose %171, [1, 0, 2] : vector<16x8x52xf32> -> vector<8x16x52xf32>
    %c0_7 = arith.constant 0 : index
    %c0_8 = arith.constant 0 : index
    %c0_9 = arith.constant 0 : index
    %173 = vector.load %arg3[%c0_7, %c0_8, %c0_9] : memref<8x16x52xf32, #tpu.memory_space<vmem>>, vector<8x16x52xf32>
    tpu.vector_store %arg3[%c0_7, %c0_8, %c0_9], %172 {strides = array<i32>} : memref<8x16x52xf32, #tpu.memory_space<vmem>>, vector<8x16x52xf32>,
    return
  }
  func.func @transform_0(%arg0: i32) -> (i32, i32) {
    %c0_i32 = arith.constant 0 : i32
    %c0_i32_0 = arith.constant 0 : i32
    %c0_i32_1 = arith.constant 0 : i32
    return %c0_i32, %c0_i32_0 : i32, i32
  }
  func.func @transform_1(%arg0: i32) -> (i32, i32) {
    %c0_i32 = arith.constant 0 : i32
    %c0_i32_0 = arith.constant 0 : i32
    return %arg0, %c0_i32 : i32, i32
  }
  func.func @transform_2(%arg0: i32) -> (i32, i32, i32) {
    %c0_i32 = arith.constant 0 : i32
    %c0_i32_0 = arith.constant 0 : i32
    %c0_i32_1 = arith.constant 0 : i32
    return %arg0, %c0_i32, %c0_i32_0 : i32, i32, i32
  }
}

module attributes {stable_mosaic.version = 11 : i64} {
  func.func @kernel(%arg0: i32, %arg1: memref<1x52xi32, #tpu.memory_space<vmem>>, %arg2: memref<8x64xf32, #tpu.memory_space<vmem>>, %arg3: memref<16x8x52xf32, #tpu.memory_space<vmem>>) attributes {dimension_semantics = [#tpu.dimension_semantics<parallel>], iteration_bounds = array<i64: 1>, scalar_prefetch = 0 : i64, scratch_operands = 0 : i64, tpu.core_type = #tpu.core_type<tc>, window_params = [{pipeline_mode = #tpu.pipeline_mode<synchronous>, transform_indices = @transform_0, window_bounds = array<i64: 1, 52>}, {transform_indices = @transform_1, window_bounds = array<i64: 8, 64>}, {transform_indices = @transform_2, window_bounds = array<i64: 16, 8, 52>}]} {
    %c0 = arith.constant 0 : index
    %c0_0 = arith.constant 0 : index
    %0 = vector.load %arg2[%c0, %c0_0] : memref<8x64xf32, #tpu.memory_space<vmem>>, vector<8x64xf32>
    %1 = vector.extract_strided_slice %0 {offsets = [0, 4], sizes = [8, 60], strides = [1, 1]} : vector<8x64xf32> to vector<8x60xf32>
    %2 = vector.extract_strided_slice %0 {offsets = [0, 3], sizes = [8, 60], strides = [1, 1]} : vector<8x64xf32> to vector<8x60xf32>
    %3 = vector.extract_strided_slice %0 {offsets = [0, 2], sizes = [8, 60], strides = [1, 1]} : vector<8x64xf32> to vector<8x60xf32>
    %4 = vector.extract_strided_slice %0 {offsets = [0, 0], sizes = [8, 60], strides = [1, 1]} : vector<8x64xf32> to vector<8x60xf32>
    %5 = arith.subf %1, %2 : vector<8x60xf32>
    %6 = arith.subf %1, %3 : vector<8x60xf32>
    %7 = arith.subf %1, %4 : vector<8x60xf32>
    %cst = arith.constant 2.000000e+00 : f32
    %8 = vector.broadcast %cst : f32 to vector<8x60xf32>
    %9 = arith.mulf %8, %2 : vector<8x60xf32>
    %10 = arith.subf %1, %9 : vector<8x60xf32>
    %11 = arith.addf %10, %3 : vector<8x60xf32>
    %12 = vector.shape_cast %5 : vector<8x60xf32> to vector<1x8x60xf32>
    %13 = vector.shape_cast %6 : vector<8x60xf32> to vector<1x8x60xf32>
    %14 = vector.shape_cast %7 : vector<8x60xf32> to vector<1x8x60xf32>
    %15 = vector.shape_cast %11 : vector<8x60xf32> to vector<1x8x60xf32>
    %16 = tpu.concatenate %12, %13, %14, %15 in 0 : vector<1x8x60xf32>, vector<1x8x60xf32>, vector<1x8x60xf32>, vector<1x8x60xf32> -> vector<4x8x60xf32>
    %17 = vector.extract_strided_slice %16 {offsets = [0, 0, 0], sizes = [4, 8, 59], strides = [1, 1, 1]} : vector<4x8x60xf32> to vector<4x8x59xf32>
    %18 = vector.extract_strided_slice %16 {offsets = [0, 0, 1], sizes = [4, 8, 59], strides = [1, 1, 1]} : vector<4x8x60xf32> to vector<4x8x59xf32>
    %19 = arith.addf %17, %18 : vector<4x8x59xf32>
    %20 = vector.extract_strided_slice %19 {offsets = [0, 0, 0], sizes = [4, 8, 57], strides = [1, 1, 1]} : vector<4x8x59xf32> to vector<4x8x57xf32>
    %21 = vector.extract_strided_slice %19 {offsets = [0, 0, 2], sizes = [4, 8, 57], strides = [1, 1, 1]} : vector<4x8x59xf32> to vector<4x8x57xf32>
    %22 = arith.addf %20, %21 : vector<4x8x57xf32>
    %23 = vector.extract_strided_slice %22 {offsets = [0, 0, 0], sizes = [4, 8, 53], strides = [1, 1, 1]} : vector<4x8x57xf32> to vector<4x8x53xf32>
    %24 = vector.extract_strided_slice %22 {offsets = [0, 0, 4], sizes = [4, 8, 53], strides = [1, 1, 1]} : vector<4x8x57xf32> to vector<4x8x53xf32>
    %25 = arith.addf %23, %24 : vector<4x8x53xf32>
    %26 = vector.extract_strided_slice %25 {offsets = [0, 0, 0], sizes = [4, 8, 52], strides = [1, 1, 1]} : vector<4x8x53xf32> to vector<4x8x52xf32>
    %27 = vector.extract_strided_slice %16 {offsets = [0, 0, 8], sizes = [4, 8, 52], strides = [1, 1, 1]} : vector<4x8x60xf32> to vector<4x8x52xf32>
    %28 = arith.addf %26, %27 : vector<4x8x52xf32>
    %cst_1 = arith.constant 0.111111112 : f32
    %29 = vector.broadcast %cst_1 : f32 to vector<4x8x52xf32>
    %30 = arith.mulf %28, %29 : vector<4x8x52xf32>
    %31 = vector.extract_strided_slice %30 {offsets = [0, 0, 0], sizes = [4, 8, 51], strides = [1, 1, 1]} : vector<4x8x52xf32> to vector<4x8x51xf32>
    %32 = vector.extract_strided_slice %30 {offsets = [0, 0, 1], sizes = [4, 8, 51], strides = [1, 1, 1]} : vector<4x8x52xf32> to vector<4x8x51xf32>
    %33 = arith.addf %31, %32 : vector<4x8x51xf32>
    %34 = vector.extract_strided_slice %33 {offsets = [0, 0, 0], sizes = [4, 8, 49], strides = [1, 1, 1]} : vector<4x8x51xf32> to vector<4x8x49xf32>
    %35 = vector.extract_strided_slice %33 {offsets = [0, 0, 2], sizes = [4, 8, 49], strides = [1, 1, 1]} : vector<4x8x51xf32> to vector<4x8x49xf32>
    %36 = arith.addf %34, %35 : vector<4x8x49xf32>
    %37 = vector.extract_strided_slice %36 {offsets = [0, 0, 0], sizes = [4, 8, 45], strides = [1, 1, 1]} : vector<4x8x49xf32> to vector<4x8x45xf32>
    %38 = vector.extract_strided_slice %36 {offsets = [0, 0, 4], sizes = [4, 8, 45], strides = [1, 1, 1]} : vector<4x8x49xf32> to vector<4x8x45xf32>
    %39 = arith.addf %37, %38 : vector<4x8x45xf32>
    %40 = vector.extract_strided_slice %39 {offsets = [0, 0, 0], sizes = [4, 8, 44], strides = [1, 1, 1]} : vector<4x8x45xf32> to vector<4x8x44xf32>
    %41 = vector.extract_strided_slice %30 {offsets = [0, 0, 8], sizes = [4, 8, 44], strides = [1, 1, 1]} : vector<4x8x52xf32> to vector<4x8x44xf32>
    %42 = arith.addf %40, %41 : vector<4x8x44xf32>
    %cst_2 = arith.constant 0.111111112 : f32
    %43 = vector.broadcast %cst_2 : f32 to vector<4x8x44xf32>
    %44 = arith.mulf %42, %43 : vector<4x8x44xf32>
    %45 = vector.extract_strided_slice %30 {offsets = [0, 0, 0], sizes = [4, 8, 51], strides = [1, 1, 1]} : vector<4x8x52xf32> to vector<4x8x51xf32>
    %46 = vector.extract_strided_slice %30 {offsets = [0, 0, 1], sizes = [4, 8, 51], strides = [1, 1, 1]} : vector<4x8x52xf32> to vector<4x8x51xf32>
    %47 = arith.maximumf %45, %46 : vector<4x8x51xf32>
    %48 = vector.extract_strided_slice %47 {offsets = [0, 0, 0], sizes = [4, 8, 49], strides = [1, 1, 1]} : vector<4x8x51xf32> to vector<4x8x49xf32>
    %49 = vector.extract_strided_slice %47 {offsets = [0, 0, 2], sizes = [4, 8, 49], strides = [1, 1, 1]} : vector<4x8x51xf32> to vector<4x8x49xf32>
    %50 = arith.maximumf %48, %49 : vector<4x8x49xf32>
    %51 = vector.extract_strided_slice %50 {offsets = [0, 0, 0], sizes = [4, 8, 45], strides = [1, 1, 1]} : vector<4x8x49xf32> to vector<4x8x45xf32>
    %52 = vector.extract_strided_slice %50 {offsets = [0, 0, 4], sizes = [4, 8, 45], strides = [1, 1, 1]} : vector<4x8x49xf32> to vector<4x8x45xf32>
    %53 = arith.maximumf %51, %52 : vector<4x8x45xf32>
    %54 = vector.extract_strided_slice %53 {offsets = [0, 0, 0], sizes = [4, 8, 44], strides = [1, 1, 1]} : vector<4x8x45xf32> to vector<4x8x44xf32>
    %55 = vector.extract_strided_slice %30 {offsets = [0, 0, 8], sizes = [4, 8, 44], strides = [1, 1, 1]} : vector<4x8x52xf32> to vector<4x8x44xf32>
    %56 = arith.maximumf %54, %55 : vector<4x8x44xf32>
    %57 = tpu.concatenate %44, %56 in 0 : vector<4x8x44xf32>, vector<4x8x44xf32> -> vector<8x8x44xf32>
    %58 = vector.extract_strided_slice %57 {offsets = [0, 0, 0], sizes = [8, 8, 1], strides = [1, 1, 1]} : vector<8x8x44xf32> to vector<8x8x1xf32>
    %59 = vector.extract_strided_slice %57 {offsets = [0, 0, 0], sizes = [8, 8, 6], strides = [1, 1, 1]} : vector<8x8x44xf32> to vector<8x8x6xf32>
    %60 = vector.extract_strided_slice %57 {offsets = [0, 0, 5], sizes = [8, 8, 7], strides = [1, 1, 1]} : vector<8x8x44xf32> to vector<8x8x7xf32>
    %61 = vector.extract_strided_slice %57 {offsets = [0, 0, 11], sizes = [8, 8, 6], strides = [1, 1, 1]} : vector<8x8x44xf32> to vector<8x8x6xf32>
    %62 = vector.extract_strided_slice %57 {offsets = [0, 0, 16], sizes = [8, 8, 7], strides = [1, 1, 1]} : vector<8x8x44xf32> to vector<8x8x7xf32>
    %63 = vector.extract_strided_slice %57 {offsets = [0, 0, 22], sizes = [8, 8, 6], strides = [1, 1, 1]} : vector<8x8x44xf32> to vector<8x8x6xf32>
    %64 = vector.extract_strided_slice %57 {offsets = [0, 0, 27], sizes = [8, 8, 7], strides = [1, 1, 1]} : vector<8x8x44xf32> to vector<8x8x7xf32>
    %65 = vector.extract_strided_slice %57 {offsets = [0, 0, 33], sizes = [8, 8, 6], strides = [1, 1, 1]} : vector<8x8x44xf32> to vector<8x8x6xf32>
    %66 = vector.extract_strided_slice %57 {offsets = [0, 0, 38], sizes = [8, 8, 6], strides = [1, 1, 1]} : vector<8x8x44xf32> to vector<8x8x6xf32>
    %67 = tpu.concatenate %58, %59, %60, %61, %62, %63, %64, %65, %66 in 2 : vector<8x8x1xf32>, vector<8x8x6xf32>, vector<8x8x7xf32>, vector<8x8x6xf32>, vector<8x8x7xf32>, vector<8x8x6xf32>, vector<8x8x7xf32>, vector<8x8x6xf32>, vector<8x8x6xf32> -> vector<8x8x52xf32>
    %cst_3 = arith.constant 0.000000e+00 : f32
    %68 = vector.broadcast %cst_3 : f32 to vector<8x8x15xf32>
    %cst_4 = arith.constant 0.000000e+00 : f32
    %69 = vector.broadcast %cst_4 : f32 to vector<8x8x8xf32>
    %70 = tpu.concatenate %68, %57, %69 in 2 : vector<8x8x15xf32>, vector<8x8x44xf32>, vector<8x8x8xf32> -> vector<8x8x67xf32>
    %c0_5 = arith.constant 0 : index
    %c0_6 = arith.constant 0 : index
    %71 = vector.load %arg1[%c0_5, %c0_6] : memref<1x52xi32, #tpu.memory_space<vmem>>, vector<1x52xi32>
    %72 = vector.extract_strided_slice %70 {offsets = [0, 0, 15], sizes = [8, 8, 52], strides = [1, 1, 1]} : vector<8x8x67xf32> to vector<8x8x52xf32>
    %73 = vector.extract_strided_slice %70 {offsets = [0, 0, 14], sizes = [8, 8, 52], strides = [1, 1, 1]} : vector<8x8x67xf32> to vector<8x8x52xf32>
    %c1_i32 = arith.constant 1 : i32
    %74 = vector.broadcast %c1_i32 : i32 to vector<1x52xi32>
    %75 = arith.cmpi eq, %71, %74 : vector<1x52xi32>
    %76 = vector.shape_cast %75 : vector<1x52xi1> to vector<1x1x52xi1>
    %77 = vector.broadcast %76 : vector<1x1x52xi1> to vector<8x8x52xi1>
    %78 = arith.select %77, %73, %72 : vector<8x8x52xi1>, vector<8x8x52xf32>
    %79 = vector.extract_strided_slice %70 {offsets = [0, 0, 13], sizes = [8, 8, 52], strides = [1, 1, 1]} : vector<8x8x67xf32> to vector<8x8x52xf32>
    %c2_i32 = arith.constant 2 : i32
    %80 = vector.broadcast %c2_i32 : i32 to vector<1x52xi32>
    %81 = arith.cmpi eq, %71, %80 : vector<1x52xi32>
    %82 = vector.shape_cast %81 : vector<1x52xi1> to vector<1x1x52xi1>
    %83 = vector.broadcast %82 : vector<1x1x52xi1> to vector<8x8x52xi1>
    %84 = arith.select %83, %79, %78 : vector<8x8x52xi1>, vector<8x8x52xf32>
    %85 = vector.extract_strided_slice %70 {offsets = [0, 0, 12], sizes = [8, 8, 52], strides = [1, 1, 1]} : vector<8x8x67xf32> to vector<8x8x52xf32>
    %c3_i32 = arith.constant 3 : i32
    %86 = vector.broadcast %c3_i32 : i32 to vector<1x52xi32>
    %87 = arith.cmpi eq, %71, %86 : vector<1x52xi32>
    %88 = vector.shape_cast %87 : vector<1x52xi1> to vector<1x1x52xi1>
    %89 = vector.broadcast %88 : vector<1x1x52xi1> to vector<8x8x52xi1>
    %90 = arith.select %89, %85, %84 : vector<8x8x52xi1>, vector<8x8x52xf32>
    %91 = vector.extract_strided_slice %70 {offsets = [0, 0, 11], sizes = [8, 8, 52], strides = [1, 1, 1]} : vector<8x8x67xf32> to vector<8x8x52xf32>
    %c4_i32 = arith.constant 4 : i32
    %92 = vector.broadcast %c4_i32 : i32 to vector<1x52xi32>
    %93 = arith.cmpi eq, %71, %92 : vector<1x52xi32>
    %94 = vector.shape_cast %93 : vector<1x52xi1> to vector<1x1x52xi1>
    %95 = vector.broadcast %94 : vector<1x1x52xi1> to vector<8x8x52xi1>
    %96 = arith.select %95, %91, %90 : vector<8x8x52xi1>, vector<8x8x52xf32>
    %97 = vector.extract_strided_slice %70 {offsets = [0, 0, 10], sizes = [8, 8, 52], strides = [1, 1, 1]} : vector<8x8x67xf32> to vector<8x8x52xf32>
    %c5_i32 = arith.constant 5 : i32
    %98 = vector.broadcast %c5_i32 : i32 to vector<1x52xi32>
    %99 = arith.cmpi eq, %71, %98 : vector<1x52xi32>
    %100 = vector.shape_cast %99 : vector<1x52xi1> to vector<1x1x52xi1>
    %101 = vector.broadcast %100 : vector<1x1x52xi1> to vector<8x8x52xi1>
    %102 = arith.select %101, %97, %96 : vector<8x8x52xi1>, vector<8x8x52xf32>
    %103 = vector.extract_strided_slice %70 {offsets = [0, 0, 9], sizes = [8, 8, 52], strides = [1, 1, 1]} : vector<8x8x67xf32> to vector<8x8x52xf32>
    %c6_i32 = arith.constant 6 : i32
    %104 = vector.broadcast %c6_i32 : i32 to vector<1x52xi32>
    %105 = arith.cmpi eq, %71, %104 : vector<1x52xi32>
    %106 = vector.shape_cast %105 : vector<1x52xi1> to vector<1x1x52xi1>
    %107 = vector.broadcast %106 : vector<1x1x52xi1> to vector<8x8x52xi1>
    %108 = arith.select %107, %103, %102 : vector<8x8x52xi1>, vector<8x8x52xf32>
    %109 = vector.extract_strided_slice %70 {offsets = [0, 0, 8], sizes = [8, 8, 52], strides = [1, 1, 1]} : vector<8x8x67xf32> to vector<8x8x52xf32>
    %c7_i32 = arith.constant 7 : i32
    %110 = vector.broadcast %c7_i32 : i32 to vector<1x52xi32>
    %111 = arith.cmpi eq, %71, %110 : vector<1x52xi32>
    %112 = vector.shape_cast %111 : vector<1x52xi1> to vector<1x1x52xi1>
    %113 = vector.broadcast %112 : vector<1x1x52xi1> to vector<8x8x52xi1>
    %114 = arith.select %113, %109, %108 : vector<8x8x52xi1>, vector<8x8x52xf32>
    %115 = vector.extract_strided_slice %70 {offsets = [0, 0, 7], sizes = [8, 8, 52], strides = [1, 1, 1]} : vector<8x8x67xf32> to vector<8x8x52xf32>
    %c8_i32 = arith.constant 8 : i32
    %116 = vector.broadcast %c8_i32 : i32 to vector<1x52xi32>
    %117 = arith.cmpi eq, %71, %116 : vector<1x52xi32>
    %118 = vector.shape_cast %117 : vector<1x52xi1> to vector<1x1x52xi1>
    %119 = vector.broadcast %118 : vector<1x1x52xi1> to vector<8x8x52xi1>
    %120 = arith.select %119, %115, %114 : vector<8x8x52xi1>, vector<8x8x52xf32>
    %121 = vector.extract_strided_slice %70 {offsets = [0, 0, 6], sizes = [8, 8, 52], strides = [1, 1, 1]} : vector<8x8x67xf32> to vector<8x8x52xf32>
    %c9_i32 = arith.constant 9 : i32
    %122 = vector.broadcast %c9_i32 : i32 to vector<1x52xi32>
    %123 = arith.cmpi eq, %71, %122 : vector<1x52xi32>
    %124 = vector.shape_cast %123 : vector<1x52xi1> to vector<1x1x52xi1>
    %125 = vector.broadcast %124 : vector<1x1x52xi1> to vector<8x8x52xi1>
    %126 = arith.select %125, %121, %120 : vector<8x8x52xi1>, vector<8x8x52xf32>
    %127 = vector.extract_strided_slice %70 {offsets = [0, 0, 5], sizes = [8, 8, 52], strides = [1, 1, 1]} : vector<8x8x67xf32> to vector<8x8x52xf32>
    %c10_i32 = arith.constant 10 : i32
    %128 = vector.broadcast %c10_i32 : i32 to vector<1x52xi32>
    %129 = arith.cmpi eq, %71, %128 : vector<1x52xi32>
    %130 = vector.shape_cast %129 : vector<1x52xi1> to vector<1x1x52xi1>
    %131 = vector.broadcast %130 : vector<1x1x52xi1> to vector<8x8x52xi1>
    %132 = arith.select %131, %127, %126 : vector<8x8x52xi1>, vector<8x8x52xf32>
    %133 = vector.extract_strided_slice %70 {offsets = [0, 0, 4], sizes = [8, 8, 52], strides = [1, 1, 1]} : vector<8x8x67xf32> to vector<8x8x52xf32>
    %c11_i32 = arith.constant 11 : i32
    %134 = vector.broadcast %c11_i32 : i32 to vector<1x52xi32>
    %135 = arith.cmpi eq, %71, %134 : vector<1x52xi32>
    %136 = vector.shape_cast %135 : vector<1x52xi1> to vector<1x1x52xi1>
    %137 = vector.broadcast %136 : vector<1x1x52xi1> to vector<8x8x52xi1>
    %138 = arith.select %137, %133, %132 : vector<8x8x52xi1>, vector<8x8x52xf32>
    %139 = vector.extract_strided_slice %70 {offsets = [0, 0, 3], sizes = [8, 8, 52], strides = [1, 1, 1]} : vector<8x8x67xf32> to vector<8x8x52xf32>
    %c12_i32 = arith.constant 12 : i32
    %140 = vector.broadcast %c12_i32 : i32 to vector<1x52xi32>
    %141 = arith.cmpi eq, %71, %140 : vector<1x52xi32>
    %142 = vector.shape_cast %141 : vector<1x52xi1> to vector<1x1x52xi1>
    %143 = vector.broadcast %142 : vector<1x1x52xi1> to vector<8x8x52xi1>
    %144 = arith.select %143, %139, %138 : vector<8x8x52xi1>, vector<8x8x52xf32>
    %145 = vector.extract_strided_slice %70 {offsets = [0, 0, 2], sizes = [8, 8, 52], strides = [1, 1, 1]} : vector<8x8x67xf32> to vector<8x8x52xf32>
    %c13_i32 = arith.constant 13 : i32
    %146 = vector.broadcast %c13_i32 : i32 to vector<1x52xi32>
    %147 = arith.cmpi eq, %71, %146 : vector<1x52xi32>
    %148 = vector.shape_cast %147 : vector<1x52xi1> to vector<1x1x52xi1>
    %149 = vector.broadcast %148 : vector<1x1x52xi1> to vector<8x8x52xi1>
    %150 = arith.select %149, %145, %144 : vector<8x8x52xi1>, vector<8x8x52xf32>
    %151 = vector.extract_strided_slice %70 {offsets = [0, 0, 1], sizes = [8, 8, 52], strides = [1, 1, 1]} : vector<8x8x67xf32> to vector<8x8x52xf32>
    %c14_i32 = arith.constant 14 : i32
    %152 = vector.broadcast %c14_i32 : i32 to vector<1x52xi32>
    %153 = arith.cmpi eq, %71, %152 : vector<1x52xi32>
    %154 = vector.shape_cast %153 : vector<1x52xi1> to vector<1x1x52xi1>
    %155 = vector.broadcast %154 : vector<1x1x52xi1> to vector<8x8x52xi1>
    %156 = arith.select %155, %151, %150 : vector<8x8x52xi1>, vector<8x8x52xf32>
    %157 = vector.extract_strided_slice %70 {offsets = [0, 0, 0], sizes = [8, 8, 52], strides = [1, 1, 1]} : vector<8x8x67xf32> to vector<8x8x52xf32>
    %c15_i32 = arith.constant 15 : i32
    %158 = vector.broadcast %c15_i32 : i32 to vector<1x52xi32>
    %159 = arith.cmpi eq, %71, %158 : vector<1x52xi32>
    %160 = vector.shape_cast %159 : vector<1x52xi1> to vector<1x1x52xi1>
    %161 = vector.broadcast %160 : vector<1x1x52xi1> to vector<8x8x52xi1>
    %162 = arith.select %161, %157, %156 : vector<8x8x52xi1>, vector<8x8x52xf32>
    %163 = vector.extract_strided_slice %67 {offsets = [0, 0, 0], sizes = [4, 8, 52], strides = [1, 1, 1]} : vector<8x8x52xf32> to vector<4x8x52xf32>
    %164 = arith.addf %163, %30 : vector<4x8x52xf32>
    %c0_7 = arith.constant 0 : index
    %c0_8 = arith.constant 0 : index
    %c0_9 = arith.constant 0 : index
    %165 = vector.load %arg3[%c0_7, %c0_8, %c0_9] : memref<16x8x52xf32, #tpu.memory_space<vmem>>, vector<4x8x52xf32>
    tpu.vector_store %arg3[%c0_7, %c0_8, %c0_9], %164 {strides = array<i32>} : memref<16x8x52xf32, #tpu.memory_space<vmem>>, vector<4x8x52xf32>,
    %166 = vector.extract_strided_slice %162 {offsets = [0, 0, 0], sizes = [4, 8, 52], strides = [1, 1, 1]} : vector<8x8x52xf32> to vector<4x8x52xf32>
    %167 = arith.addf %166, %30 : vector<4x8x52xf32>
    %c4 = arith.constant 4 : index
    %c0_10 = arith.constant 0 : index
    %c0_11 = arith.constant 0 : index
    %168 = vector.load %arg3[%c4, %c0_10, %c0_11] : memref<16x8x52xf32, #tpu.memory_space<vmem>>, vector<4x8x52xf32>
    tpu.vector_store %arg3[%c4, %c0_10, %c0_11], %167 {strides = array<i32>} : memref<16x8x52xf32, #tpu.memory_space<vmem>>, vector<4x8x52xf32>,
    %169 = vector.extract_strided_slice %67 {offsets = [4, 0, 0], sizes = [4, 8, 52], strides = [1, 1, 1]} : vector<8x8x52xf32> to vector<4x8x52xf32>
    %170 = arith.addf %169, %30 : vector<4x8x52xf32>
    %c8 = arith.constant 8 : index
    %c0_12 = arith.constant 0 : index
    %c0_13 = arith.constant 0 : index
    %171 = vector.load %arg3[%c8, %c0_12, %c0_13] : memref<16x8x52xf32, #tpu.memory_space<vmem>>, vector<4x8x52xf32>
    tpu.vector_store %arg3[%c8, %c0_12, %c0_13], %170 {strides = array<i32>} : memref<16x8x52xf32, #tpu.memory_space<vmem>>, vector<4x8x52xf32>,
    %172 = vector.extract_strided_slice %162 {offsets = [4, 0, 0], sizes = [4, 8, 52], strides = [1, 1, 1]} : vector<8x8x52xf32> to vector<4x8x52xf32>
    %173 = arith.addf %172, %30 : vector<4x8x52xf32>
    %c12 = arith.constant 12 : index
    %c0_14 = arith.constant 0 : index
    %c0_15 = arith.constant 0 : index
    %174 = vector.load %arg3[%c12, %c0_14, %c0_15] : memref<16x8x52xf32, #tpu.memory_space<vmem>>, vector<4x8x52xf32>
    tpu.vector_store %arg3[%c12, %c0_14, %c0_15], %173 {strides = array<i32>} : memref<16x8x52xf32, #tpu.memory_space<vmem>>, vector<4x8x52xf32>,
    return
  }
  func.func @transform_0(%arg0: i32) -> (i32, i32) {
    %c0_i32 = arith.constant 0 : i32
    %c0_i32_0 = arith.constant 0 : i32
    %c0_i32_1 = arith.constant 0 : i32
    return %c0_i32, %c0_i32_0 : i32, i32
  }
  func.func @transform_1(%arg0: i32) -> (i32, i32) {
    %c0_i32 = arith.constant 0 : i32
    %c0_i32_0 = arith.constant 0 : i32
    return %arg0, %c0_i32 : i32, i32
  }
  func.func @transform_2(%arg0: i32) -> (i32, i32, i32) {
    %c0_i32 = arith.constant 0 : i32
    %c0_i32_0 = arith.constant 0 : i32
    %c0_i32_1 = arith.constant 0 : i32
    return %c0_i32, %arg0, %c0_i32_0 : i32, i32, i32
  }
}

</mosaic_0001>

<llo_original>
// kernel: tpu_custom_call.1
$region0: #{tpu_custom_call.1}
  #allocation0 [shape = 'u32[]', space=smem, size = 0x4, offset = 0x4, fixed_abs, tag = 'smem constant byte address 0x4 - core index']
  #allocation1 [shape = 'u32[72,128]{1,0:T(1,128)}', space=vmem, size = 0x9000, scoped, tag = 'internal scratch']
  %s0 = inlined_call_operand.hbm [shape: s32[1,52], index: 0, kind: input, shape index: {}]
  %s1 = inlined_call_operand.hbm [shape: f32[8,64], index: 1, kind: input, shape index: {}]
  %s2 = inlined_call_operand.hbm [shape: f32[8,16,52], index: 2, kind: output, shape index: {}]
  %s3 = sld [smem:[#allocation0]]
  $region26: #{tpu_custom_call.1} parent=0
    _
  %s5 = ssub.s32 1, %s3
  %s6 = scalar_select 0, %s5, %s3
  $region1: #{tpu_custom_call.1} parent=0
    #allocation2 [shape = 'u8[512]{0}', space=vmem, size = 0x400, scoped, tag = 'input window, operand 0, single buffered']
    #allocation3 [shape = 's32[1]{0}', space=sflag, size = 0x4, scoped, tag = 'scoped memory for tpu_custom_call.1']
    #allocation4 [shape = 's32[1]{0}', space=sflag, size = 0x4, scoped, tag = 'scoped memory for tpu_custom_call.1']
    #allocation5 [shape = 'u8[4096]{0}', space=vmem, size = 0x1000, scoped, tag = 'input window, operand 1, single buffered']
    #allocation6 [shape = 's32[1]{0}', space=sflag, size = 0x4, scoped, tag = 'scoped memory for tpu_custom_call.1']
    #allocation7 [shape = 'u8[65536]{0}', space=vmem, size = 0x10000, scoped, tag = 'output window, operand 0, single buffered']
    %7 = vsyncpa [#allocation3], 0
    %8 = vsyncpa [#allocation6], 0
    %9 = vsyncpa [#allocation4], 0
    // Predicated region
    $region2: #{tpu_custom_call.1} parent=1 // pred_check
      _
    $region3: #{tpu_custom_call.1} parent=1 // pred_check_branch
      %11 = sbr.rel (0) target = $region5
    $region4: #{tpu_custom_call.1} parent=1 // pred_region
      %13 = vsyncadd [#allocation3], 0
      %s15 = sshll.u32 %s0, 4
      %s16 = int_to_ptr.hbm [resolvable:$true] %s15
      %s17 = sshll.u32 [#allocation2], 4
      %s18 = int_to_ptr.vmem [resolvable:$true] %s17
      %20 = dma.hbm_to_vmem [thread:$0]  %s16, 16, %s18, [#allocation3]
    $region5: #{tpu_custom_call.1} parent=1 // pred_fallthru
      _
    // Predicated region
    $region6: #{tpu_custom_call.1} parent=1 // pred_check
      _
    $region7: #{tpu_custom_call.1} parent=1 // pred_check_branch
      %22 = sbr.rel (0) target = $region9
    $region8: #{tpu_custom_call.1} parent=1 // pred_region
      %24 = vsyncadd [#allocation6], 0
      %s26 = sshll.u32 %s1, 4
      %s27 = int_to_ptr.hbm [resolvable:$true] %s26
      %s28 = sshll.u32 [#allocation5], 4
      %s29 = int_to_ptr.vmem [resolvable:$true] %s28
      %31 = dma.hbm_to_vmem [thread:$0]  %s27, 128, %s29, [#allocation6]
    $region9: #{tpu_custom_call.1} parent=1 // pred_fallthru
      _
    // Predicated region
    $region10: #{tpu_custom_call.1} parent=1 // pred_check
      _
    $region11: #{tpu_custom_call.1} parent=1 // pred_check_branch
      %33 = sbr.rel (0) target = $region13
    $region12: #{tpu_custom_call.1} parent=1 // pred_region
      %35 = dma.done [#allocation3], 16
    $region13: #{tpu_custom_call.1} parent=1 // pred_fallthru
      _
    // Predicated region
    $region14: #{tpu_custom_call.1} parent=1 // pred_check
      _
    $region15: #{tpu_custom_call.1} parent=1 // pred_check_branch
      %37 = sbr.rel (0) target = $region17
    $region16: #{tpu_custom_call.1} parent=1 // pred_region
      %39 = dma.done [#allocation6], 128
    $region17: #{tpu_custom_call.1} parent=1 // pred_fallthru
      _
    %v40 = vld [vmem:[#allocation5] sm:$0xff]
    %42 = vrot.lane.b32.xlu0 %v40, 1
    %v43 = vpop.permute.xlu0 %42
    %v45 = vsub.f32 %v40, %v43
    %46 = vrot.lane.b32.xlu0 %v40, 2
    %v47 = vpop.permute.xlu0 %46
    %v49 = vsub.f32 %v40, %v47
    %50 = vrot.lane.b32.xlu0 %v40, 4
    %v51 = vpop.permute.xlu0 %50
    %v53 = vsub.f32 %v40, %v51
    %v54 = vmul.f32 %v40, 2.0
    %56 = vrot.lane.b32.xlu0 %v54, 1
    %v57 = vpop.permute.xlu0 %56
    %v59 = vsub.f32 %v40, %v57
    %v60 = vadd.f32 %v59, %v47
    %65 = vrot.lane.b32.xlu0 %v45, 127
    %v66 = vpop.permute.xlu0 %65
    %67 = vrot.lane.b32.xlu0 %v49, 127
    %v68 = vpop.permute.xlu0 %67
    %69 = vrot.lane.b32.xlu0 %v53, 127
    %v70 = vpop.permute.xlu0 %69
    %71 = vrot.lane.b32.xlu0 %v60, 127
    %v72 = vpop.permute.xlu0 %71
    %v77 = vadd.f32 %v45, %v66
    %v78 = vadd.f32 %v49, %v68
    %v79 = vadd.f32 %v53, %v70
    %v80 = vadd.f32 %v60, %v72
    %85 = vrot.lane.b32.xlu0 %v77, 126
    %v86 = vpop.permute.xlu0 %85
    %87 = vrot.lane.b32.xlu0 %v78, 126
    %v88 = vpop.permute.xlu0 %87
    %89 = vrot.lane.b32.xlu0 %v79, 126
    %v90 = vpop.permute.xlu0 %89
    %91 = vrot.lane.b32.xlu0 %v80, 126
    %v92 = vpop.permute.xlu0 %91
    %v97 = vadd.f32 %v77, %v86
    %v98 = vadd.f32 %v78, %v88
    %v99 = vadd.f32 %v79, %v90
    %v100 = vadd.f32 %v80, %v92
    %105 = vrot.lane.b32.xlu0 %v97, 124
    %v106 = vpop.permute.xlu0 %105
    %107 = vrot.lane.b32.xlu0 %v98, 124
    %v108 = vpop.permute.xlu0 %107
    %109 = vrot.lane.b32.xlu0 %v99, 124
    %v110 = vpop.permute.xlu0 %109
    %111 = vrot.lane.b32.xlu0 %v100, 124
    %v112 = vpop.permute.xlu0 %111
    %v117 = vadd.f32 %v97, %v106
    %v118 = vadd.f32 %v98, %v108
    %v119 = vadd.f32 %v99, %v110
    %v120 = vadd.f32 %v100, %v112
    %121 = vrot.lane.b32.xlu0 %v45, 120
    %v122 = vpop.permute.xlu0 %121
    %123 = vrot.lane.b32.xlu0 %v49, 120
    %v124 = vpop.permute.xlu0 %123
    %125 = vrot.lane.b32.xlu0 %v53, 120
    %v126 = vpop.permute.xlu0 %125
    %127 = vrot.lane.b32.xlu0 %v60, 120
    %v128 = vpop.permute.xlu0 %127
    %v133 = vadd.f32 %v117, %v122
    %v134 = vadd.f32 %v118, %v124
    %v135 = vadd.f32 %v119, %v126
    %v136 = vadd.f32 %v120, %v128
    %v137 = vmul.f32 %v133, 0.11111111
    %v138 = vmul.f32 %v134, 0.11111111
    %v139 = vmul.f32 %v135, 0.11111111
    %v140 = vmul.f32 %v136, 0.11111111
    %145 = vrot.lane.b32.xlu0 %v137, 127
    %v146 = vpop.permute.xlu0 %145
    %147 = vrot.lane.b32.xlu0 %v138, 127
    %v148 = vpop.permute.xlu0 %147
    %149 = vrot.lane.b32.xlu0 %v139, 127
    %v150 = vpop.permute.xlu0 %149
    %151 = vrot.lane.b32.xlu0 %v140, 127
    %v152 = vpop.permute.xlu0 %151
    %v157 = vadd.f32 %v137, %v146
    %v158 = vadd.f32 %v138, %v148
    %v159 = vadd.f32 %v139, %v150
    %v160 = vadd.f32 %v140, %v152
    %165 = vrot.lane.b32.xlu0 %v157, 126
    %v166 = vpop.permute.xlu0 %165
    %167 = vrot.lane.b32.xlu0 %v158, 126
    %v168 = vpop.permute.xlu0 %167
    %169 = vrot.lane.b32.xlu0 %v159, 126
    %v170 = vpop.permute.xlu0 %169
    %171 = vrot.lane.b32.xlu0 %v160, 126
    %v172 = vpop.permute.xlu0 %171
    %v177 = vadd.f32 %v157, %v166
    %v178 = vadd.f32 %v158, %v168
    %v179 = vadd.f32 %v159, %v170
    %v180 = vadd.f32 %v160, %v172
    %185 = vrot.lane.b32.xlu0 %v177, 124
    %v186 = vpop.permute.xlu0 %185
    %187 = vrot.lane.b32.xlu0 %v178, 124
    %v188 = vpop.permute.xlu0 %187
    %189 = vrot.lane.b32.xlu0 %v179, 124
    %v190 = vpop.permute.xlu0 %189
    %191 = vrot.lane.b32.xlu0 %v180, 124
    %v192 = vpop.permute.xlu0 %191
    %v197 = vadd.f32 %v177, %v186
    %v198 = vadd.f32 %v178, %v188
    %v199 = vadd.f32 %v179, %v190
    %v200 = vadd.f32 %v180, %v192
    %201 = vrot.lane.b32.xlu0 %v137, 120
    %v202 = vpop.permute.xlu0 %201
    %203 = vrot.lane.b32.xlu0 %v138, 120
    %v204 = vpop.permute.xlu0 %203
    %205 = vrot.lane.b32.xlu0 %v139, 120
    %v206 = vpop.permute.xlu0 %205
    %207 = vrot.lane.b32.xlu0 %v140, 120
    %v208 = vpop.permute.xlu0 %207
    %v213 = vadd.f32 %v197, %v202
    %v214 = vadd.f32 %v198, %v204
    %v215 = vadd.f32 %v199, %v206
    %v216 = vadd.f32 %v200, %v208
    %v217 = vmul.f32 %v213, 0.11111111
    %v218 = vmul.f32 %v214, 0.11111111
    %v219 = vmul.f32 %v215, 0.11111111
    %v220 = vmul.f32 %v216, 0.11111111
    %v221 = vmax.f32 %v137, %v146
    %v222 = vmax.f32 %v138, %v148
    %v223 = vmax.f32 %v139, %v150
    %v224 = vmax.f32 %v140, %v152
    %229 = vrot.lane.b32.xlu0 %v221, 126
    %v230 = vpop.permute.xlu0 %229
    %231 = vrot.lane.b32.xlu0 %v222, 126
    %v232 = vpop.permute.xlu0 %231
    %233 = vrot.lane.b32.xlu0 %v223, 126
    %v234 = vpop.permute.xlu0 %233
    %235 = vrot.lane.b32.xlu0 %v224, 126
    %v236 = vpop.permute.xlu0 %235
    %v241 = vmax.f32 %v221, %v230
    %v242 = vmax.f32 %v222, %v232
    %v243 = vmax.f32 %v223, %v234
    %v244 = vmax.f32 %v224, %v236
    %249 = vrot.lane.b32.xlu0 %v241, 124
    %v250 = vpop.permute.xlu0 %249
    %251 = vrot.lane.b32.xlu0 %v242, 124
    %v252 = vpop.permute.xlu0 %251
    %253 = vrot.lane.b32.xlu0 %v243, 124
    %v254 = vpop.permute.xlu0 %253
    %255 = vrot.lane.b32.xlu0 %v244, 124
    %v256 = vpop.permute.xlu0 %255
    %v261 = vmax.f32 %v241, %v250
    %v262 = vmax.f32 %v242, %v252
    %v263 = vmax.f32 %v243, %v254
    %v264 = vmax.f32 %v244, %v256
    %v265 = vmax.f32 %v261, %v202
    %v266 = vmax.f32 %v262, %v204
    %v267 = vmax.f32 %v263, %v206
    %v268 = vmax.f32 %v264, %v208
    %277 = vrot.lane.b32.xlu0 %v217, 124
    %v278 = vpop.permute.xlu0 %277
    %279 = vrot.lane.b32.xlu0 %v218, 124
    %v280 = vpop.permute.xlu0 %279
    %281 = vrot.lane.b32.xlu0 %v219, 124
    %v282 = vpop.permute.xlu0 %281
    %283 = vrot.lane.b32.xlu0 %v220, 124
    %v284 = vpop.permute.xlu0 %283
    %285 = vrot.lane.b32.xlu0 %v265, 124
    %v286 = vpop.permute.xlu0 %285
    %287 = vrot.lane.b32.xlu0 %v266, 124
    %v288 = vpop.permute.xlu0 %287
    %289 = vrot.lane.b32.xlu0 %v267, 124
    %v290 = vpop.permute.xlu0 %289
    %291 = vrot.lane.b32.xlu0 %v268, 124
    %v292 = vpop.permute.xlu0 %291
    %301 = vrot.lane.b32.xlu0 %v217, 125
    %v302 = vpop.permute.xlu0 %301
    %303 = vrot.lane.b32.xlu0 %v218, 125
    %v304 = vpop.permute.xlu0 %303
    %305 = vrot.lane.b32.xlu0 %v219, 125
    %v306 = vpop.permute.xlu0 %305
    %307 = vrot.lane.b32.xlu0 %v220, 125
    %v308 = vpop.permute.xlu0 %307
    %309 = vrot.lane.b32.xlu0 %v265, 125
    %v310 = vpop.permute.xlu0 %309
    %311 = vrot.lane.b32.xlu0 %v266, 125
    %v312 = vpop.permute.xlu0 %311
    %313 = vrot.lane.b32.xlu0 %v267, 125
    %v314 = vpop.permute.xlu0 %313
    %315 = vrot.lane.b32.xlu0 %v268, 125
    %v316 = vpop.permute.xlu0 %315
    %325 = vrot.lane.b32.xlu0 %v217, 126
    %v326 = vpop.permute.xlu0 %325
    %327 = vrot.lane.b32.xlu0 %v218, 126
    %v328 = vpop.permute.xlu0 %327
    %329 = vrot.lane.b32.xlu0 %v219, 126
    %v330 = vpop.permute.xlu0 %329
    %331 = vrot.lane.b32.xlu0 %v220, 126
    %v332 = vpop.permute.xlu0 %331
    %333 = vrot.lane.b32.xlu0 %v265, 126
    %v334 = vpop.permute.xlu0 %333
    %335 = vrot.lane.b32.xlu0 %v266, 126
    %v336 = vpop.permute.xlu0 %335
    %337 = vrot.lane.b32.xlu0 %v267, 126
    %v338 = vpop.permute.xlu0 %337
    %339 = vrot.lane.b32.xlu0 %v268, 126
    %v340 = vpop.permute.xlu0 %339
    %349 = vrot.lane.b32.xlu0 %v217, 127
    %v350 = vpop.permute.xlu0 %349
    %351 = vrot.lane.b32.xlu0 %v218, 127
    %v352 = vpop.permute.xlu0 %351
    %353 = vrot.lane.b32.xlu0 %v219, 127
    %v354 = vpop.permute.xlu0 %353
    %355 = vrot.lane.b32.xlu0 %v220, 127
    %v356 = vpop.permute.xlu0 %355
    %357 = vrot.lane.b32.xlu0 %v265, 127
    %v358 = vpop.permute.xlu0 %357
    %359 = vrot.lane.b32.xlu0 %v266, 127
    %v360 = vpop.permute.xlu0 %359
    %361 = vrot.lane.b32.xlu0 %v267, 127
    %v362 = vpop.permute.xlu0 %361
    %363 = vrot.lane.b32.xlu0 %v268, 127
    %v364 = vpop.permute.xlu0 %363
    %373 = vrot.lane.b32.xlu0 %v217, 1
    %v374 = vpop.permute.xlu0 %373
    %375 = vrot.lane.b32.xlu0 %v218, 1
    %v376 = vpop.permute.xlu0 %375
    %377 = vrot.lane.b32.xlu0 %v219, 1
    %v378 = vpop.permute.xlu0 %377
    %379 = vrot.lane.b32.xlu0 %v220, 1
    %v380 = vpop.permute.xlu0 %379
    %381 = vrot.lane.b32.xlu0 %v265, 1
    %v382 = vpop.permute.xlu0 %381
    %383 = vrot.lane.b32.xlu0 %v266, 1
    %v384 = vpop.permute.xlu0 %383
    %385 = vrot.lane.b32.xlu0 %v267, 1
    %v386 = vpop.permute.xlu0 %385
    %387 = vrot.lane.b32.xlu0 %v268, 1
    %v388 = vpop.permute.xlu0 %387
    %397 = vrot.lane.b32.xlu0 %v217, 2
    %v398 = vpop.permute.xlu0 %397
    %399 = vrot.lane.b32.xlu0 %v218, 2
    %v400 = vpop.permute.xlu0 %399
    %401 = vrot.lane.b32.xlu0 %v219, 2
    %v402 = vpop.permute.xlu0 %401
    %403 = vrot.lane.b32.xlu0 %v220, 2
    %v404 = vpop.permute.xlu0 %403
    %405 = vrot.lane.b32.xlu0 %v265, 2
    %v406 = vpop.permute.xlu0 %405
    %407 = vrot.lane.b32.xlu0 %v266, 2
    %v408 = vpop.permute.xlu0 %407
    %409 = vrot.lane.b32.xlu0 %v267, 2
    %v410 = vpop.permute.xlu0 %409
    %411 = vrot.lane.b32.xlu0 %v268, 2
    %v412 = vpop.permute.xlu0 %411
    %421 = vrot.lane.b32.xlu0 %v217, 3
    %v422 = vpop.permute.xlu0 %421
    %423 = vrot.lane.b32.xlu0 %v218, 3
    %v424 = vpop.permute.xlu0 %423
    %425 = vrot.lane.b32.xlu0 %v219, 3
    %v426 = vpop.permute.xlu0 %425
    %427 = vrot.lane.b32.xlu0 %v220, 3
    %v428 = vpop.permute.xlu0 %427
    %429 = vrot.lane.b32.xlu0 %v265, 3
    %v430 = vpop.permute.xlu0 %429
    %431 = vrot.lane.b32.xlu0 %v266, 3
    %v432 = vpop.permute.xlu0 %431
    %433 = vrot.lane.b32.xlu0 %v267, 3
    %v434 = vpop.permute.xlu0 %433
    %435 = vrot.lane.b32.xlu0 %v268, 3
    %v436 = vpop.permute.xlu0 %435
    %445 = vrot.lane.b32.xlu0 %v217, 4
    %v446 = vpop.permute.xlu0 %445
    %447 = vrot.lane.b32.xlu0 %v218, 4
    %v448 = vpop.permute.xlu0 %447
    %449 = vrot.lane.b32.xlu0 %v219, 4
    %v450 = vpop.permute.xlu0 %449
    %451 = vrot.lane.b32.xlu0 %v220, 4
    %v452 = vpop.permute.xlu0 %451
    %453 = vrot.lane.b32.xlu0 %v265, 4
    %v454 = vpop.permute.xlu0 %453
    %455 = vrot.lane.b32.xlu0 %v266, 4
    %v456 = vpop.permute.xlu0 %455
    %457 = vrot.lane.b32.xlu0 %v267, 4
    %v458 = vpop.permute.xlu0 %457
    %459 = vrot.lane.b32.xlu0 %v268, 4
    %v460 = vpop.permute.xlu0 %459
    %vm469 = vcmask 7168
    %v470 = vsel %vm469, %v278, %v302
    %v471 = vsel %vm469, %v280, %v304
    %v472 = vsel %vm469, %v282, %v306
    %v473 = vsel %vm469, %v284, %v308
    %v474 = vsel %vm469, %v286, %v310
    %v475 = vsel %vm469, %v288, %v312
    %v476 = vsel %vm469, %v290, %v314
    %v477 = vsel %vm469, %v292, %v316
    %vm478 = vcmask 56320
    %v479 = vsel %vm478, %v470, %v326
    %v480 = vsel %vm478, %v471, %v328
    %v481 = vsel %vm478, %v472, %v330
    %v482 = vsel %vm478, %v473, %v332
    %v483 = vsel %vm478, %v474, %v334
    %v484 = vsel %vm478, %v475, %v336
    %v485 = vsel %vm478, %v476, %v338
    %v486 = vsel %vm478, %v477, %v340
    %vm487 = vcmask 113664
    %v488 = vsel %vm487, %v479, %v350
    %v489 = vsel %vm487, %v480, %v352
    %v490 = vsel %vm487, %v481, %v354
    %v491 = vsel %vm487, %v482, %v356
    %v492 = vsel %vm487, %v483, %v358
    %v493 = vsel %vm487, %v484, %v360
    %v494 = vsel %vm487, %v485, %v362
    %v495 = vsel %vm487, %v486, %v364
    %vm496 = vcmask 162816
    %v497 = vsel %vm496, %v488, %v217
    %v498 = vsel %vm496, %v489, %v218
    %v499 = vsel %vm496, %v490, %v219
    %v500 = vsel %vm496, %v491, %v220
    %v501 = vsel %vm496, %v492, %v265
    %v502 = vsel %vm496, %v493, %v266
    %v503 = vsel %vm496, %v494, %v267
    %v504 = vsel %vm496, %v495, %v268
    %vm505 = vcmask 220160
    %v506 = vsel %vm505, %v497, %v374
    %v507 = vsel %vm505, %v498, %v376
    %v508 = vsel %vm505, %v499, %v378
    %v509 = vsel %vm505, %v500, %v380
    %v510 = vsel %vm505, %v501, %v382
    %v511 = vsel %vm505, %v502, %v384
    %v512 = vsel %vm505, %v503, %v386
    %v513 = vsel %vm505, %v504, %v388
    %vm514 = vcmask 269312
    %v515 = vsel %vm514, %v506, %v398
    %v516 = vsel %vm514, %v507, %v400
    %v517 = vsel %vm514, %v508, %v402
    %v518 = vsel %vm514, %v509, %v404
    %v519 = vsel %vm514, %v510, %v406
    %v520 = vsel %vm514, %v511, %v408
    %v521 = vsel %vm514, %v512, %v410
    %v522 = vsel %vm514, %v513, %v412
    %vm523 = vcmask 326656
    %v524 = vsel %vm523, %v515, %v422
    %v525 = vsel %vm523, %v516, %v424
    %v526 = vsel %vm523, %v517, %v426
    %v527 = vsel %vm523, %v518, %v428
    %v528 = vsel %vm523, %v519, %v430
    %v529 = vsel %vm523, %v520, %v432
    %v530 = vsel %vm523, %v521, %v434
    %v531 = vsel %vm523, %v522, %v436
    %vm532 = vcmask 375808
    %v533 = vsel %vm532, %v524, %v446
    %v534 = vsel %vm532, %v525, %v448
    %v535 = vsel %vm532, %v526, %v450
    %v536 = vsel %vm532, %v527, %v452
    %v537 = vsel %vm532, %v528, %v454
    %v538 = vsel %vm532, %v529, %v456
    %v539 = vsel %vm532, %v530, %v458
    %v540 = vsel %vm532, %v531, %v460
    %541 = vrot.lane.b32.xlu0 %v217, 11
    %v542 = vpop.permute.xlu0 %541
    %543 = vrot.lane.b32.xlu0 %v218, 11
    %v544 = vpop.permute.xlu0 %543
    %545 = vrot.lane.b32.xlu0 %v219, 11
    %v546 = vpop.permute.xlu0 %545
    %547 = vrot.lane.b32.xlu0 %v220, 11
    %v548 = vpop.permute.xlu0 %547
    %549 = vrot.lane.b32.xlu0 %v265, 11
    %v550 = vpop.permute.xlu0 %549
    %551 = vrot.lane.b32.xlu0 %v266, 11
    %v552 = vpop.permute.xlu0 %551
    %553 = vrot.lane.b32.xlu0 %v267, 11
    %v554 = vpop.permute.xlu0 %553
    %555 = vrot.lane.b32.xlu0 %v268, 11
    %v556 = vpop.permute.xlu0 %555
    %vm565 = vcmask 121856
    %v566 = vsel %vm565, 0.0, %v542
    %v567 = vsel %vm565, 0.0, %v544
    %v568 = vsel %vm565, 0.0, %v546
    %v569 = vsel %vm565, 0.0, %v548
    %v570 = vsel %vm565, 0.0, %v550
    %v571 = vsel %vm565, 0.0, %v552
    %v572 = vsel %vm565, 0.0, %v554
    %v573 = vsel %vm565, 0.0, %v556
    %vm574 = vcmask 482304
    %v575 = vsel %vm574, %v566, 0.0
    %v576 = vsel %vm574, %v567, 0.0
    %v577 = vsel %vm574, %v568, 0.0
    %v578 = vsel %vm574, %v569, 0.0
    %v579 = vsel %vm574, %v570, 0.0
    %v580 = vsel %vm574, %v571, 0.0
    %v581 = vsel %vm574, %v572, 0.0
    %v582 = vsel %vm574, %v573, 0.0
    %v583 = vld [vmem:[#allocation2] sm:$0x1]
    %vm584 = vcmp.eq.s32.totalorder %v583, 1
    %v585 = vsel %vm584, 1, 0
    %v586 = vperm.slane %v585, 0
    %vm587 = vcmp.eq.s32.totalorder %v586, 1
    %596 = vrot.lane.b32.xlu0 %v575, 114
    %v597 = vpop.permute.xlu0 %596
    %598 = vrot.lane.b32.xlu0 %v576, 114
    %v599 = vpop.permute.xlu0 %598
    %600 = vrot.lane.b32.xlu0 %v577, 114
    %v601 = vpop.permute.xlu0 %600
    %602 = vrot.lane.b32.xlu0 %v578, 114
    %v603 = vpop.permute.xlu0 %602
    %604 = vrot.lane.b32.xlu0 %v579, 114
    %v605 = vpop.permute.xlu0 %604
    %606 = vrot.lane.b32.xlu0 %v580, 114
    %v607 = vpop.permute.xlu0 %606
    %608 = vrot.lane.b32.xlu0 %v581, 114
    %v609 = vpop.permute.xlu0 %608
    %610 = vrot.lane.b32.xlu0 %v582, 114
    %v611 = vpop.permute.xlu0 %610
    %620 = vrot.lane.b32.xlu0 %v575, 113
    %v621 = vpop.permute.xlu0 %620
    %622 = vrot.lane.b32.xlu0 %v576, 113
    %v623 = vpop.permute.xlu0 %622
    %624 = vrot.lane.b32.xlu0 %v577, 113
    %v625 = vpop.permute.xlu0 %624
    %626 = vrot.lane.b32.xlu0 %v578, 113
    %v627 = vpop.permute.xlu0 %626
    %628 = vrot.lane.b32.xlu0 %v579, 113
    %v629 = vpop.permute.xlu0 %628
    %630 = vrot.lane.b32.xlu0 %v580, 113
    %v631 = vpop.permute.xlu0 %630
    %632 = vrot.lane.b32.xlu0 %v581, 113
    %v633 = vpop.permute.xlu0 %632
    %634 = vrot.lane.b32.xlu0 %v582, 113
    %v635 = vpop.permute.xlu0 %634
    %v644 = vsel %vm587, %v597, %v621
    %v645 = vsel %vm587, %v599, %v623
    %v646 = vsel %vm587, %v601, %v625
    %v647 = vsel %vm587, %v603, %v627
    %v648 = vsel %vm587, %v605, %v629
    %v649 = vsel %vm587, %v607, %v631
    %v650 = vsel %vm587, %v609, %v633
    %v651 = vsel %vm587, %v611, %v635
    %vm652 = vcmp.eq.s32.totalorder %v583, 2
    %v653 = vsel %vm652, 1, 0
    %v654 = vperm.slane %v653, 0
    %vm655 = vcmp.eq.s32.totalorder %v654, 1
    %656 = vrot.lane.b32.xlu0 %v575, 115
    %v657 = vpop.permute.xlu0 %656
    %658 = vrot.lane.b32.xlu0 %v576, 115
    %v659 = vpop.permute.xlu0 %658
    %660 = vrot.lane.b32.xlu0 %v577, 115
    %v661 = vpop.permute.xlu0 %660
    %662 = vrot.lane.b32.xlu0 %v578, 115
    %v663 = vpop.permute.xlu0 %662
    %664 = vrot.lane.b32.xlu0 %v579, 115
    %v665 = vpop.permute.xlu0 %664
    %666 = vrot.lane.b32.xlu0 %v580, 115
    %v667 = vpop.permute.xlu0 %666
    %668 = vrot.lane.b32.xlu0 %v581, 115
    %v669 = vpop.permute.xlu0 %668
    %670 = vrot.lane.b32.xlu0 %v582, 115
    %v671 = vpop.permute.xlu0 %670
    %v680 = vsel %vm655, %v657, %v644
    %v681 = vsel %vm655, %v659, %v645
    %v682 = vsel %vm655, %v661, %v646
    %v683 = vsel %vm655, %v663, %v647
    %v684 = vsel %vm655, %v665, %v648
    %v685 = vsel %vm655, %v667, %v649
    %v686 = vsel %vm655, %v669, %v650
    %v687 = vsel %vm655, %v671, %v651
    %vm688 = vcmp.eq.s32.totalorder %v583, 3
    %v689 = vsel %vm688, 1, 0
    %v690 = vperm.slane %v689, 0
    %vm691 = vcmp.eq.s32.totalorder %v690, 1
    %692 = vrot.lane.b32.xlu0 %v575, 116
    %v693 = vpop.permute.xlu0 %692
    %694 = vrot.lane.b32.xlu0 %v576, 116
    %v695 = vpop.permute.xlu0 %694
    %696 = vrot.lane.b32.xlu0 %v577, 116
    %v697 = vpop.permute.xlu0 %696
    %698 = vrot.lane.b32.xlu0 %v578, 116
    %v699 = vpop.permute.xlu0 %698
    %700 = vrot.lane.b32.xlu0 %v579, 116
    %v701 = vpop.permute.xlu0 %700
    %702 = vrot.lane.b32.xlu0 %v580, 116
    %v703 = vpop.permute.xlu0 %702
    %704 = vrot.lane.b32.xlu0 %v581, 116
    %v705 = vpop.permute.xlu0 %704
    %706 = vrot.lane.b32.xlu0 %v582, 116
    %v707 = vpop.permute.xlu0 %706
    %v716 = vsel %vm691, %v693, %v680
    %v717 = vsel %vm691, %v695, %v681
    %v718 = vsel %vm691, %v697, %v682
    %v719 = vsel %vm691, %v699, %v683
    %v720 = vsel %vm691, %v701, %v684
    %v721 = vsel %vm691, %v703, %v685
    %v722 = vsel %vm691, %v705, %v686
    %v723 = vsel %vm691, %v707, %v687
    %vm724 = vcmp.eq.s32.totalorder %v583, 4
    %v725 = vsel %vm724, 1, 0
    %v726 = vperm.slane %v725, 0
    %vm727 = vcmp.eq.s32.totalorder %v726, 1
    %728 = vrot.lane.b32.xlu0 %v575, 117
    %v729 = vpop.permute.xlu0 %728
    %730 = vrot.lane.b32.xlu0 %v576, 117
    %v731 = vpop.permute.xlu0 %730
    %732 = vrot.lane.b32.xlu0 %v577, 117
    %v733 = vpop.permute.xlu0 %732
    %734 = vrot.lane.b32.xlu0 %v578, 117
    %v735 = vpop.permute.xlu0 %734
    %736 = vrot.lane.b32.xlu0 %v579, 117
    %v737 = vpop.permute.xlu0 %736
    %738 = vrot.lane.b32.xlu0 %v580, 117
    %v739 = vpop.permute.xlu0 %738
    %740 = vrot.lane.b32.xlu0 %v581, 117
    %v741 = vpop.permute.xlu0 %740
    %742 = vrot.lane.b32.xlu0 %v582, 117
    %v743 = vpop.permute.xlu0 %742
    %v752 = vsel %vm727, %v729, %v716
    %v753 = vsel %vm727, %v731, %v717
    %v754 = vsel %vm727, %v733, %v718
    %v755 = vsel %vm727, %v735, %v719
    %v756 = vsel %vm727, %v737, %v720
    %v757 = vsel %vm727, %v739, %v721
    %v758 = vsel %vm727, %v741, %v722
    %v759 = vsel %vm727, %v743, %v723
    %vm760 = vcmp.eq.s32.totalorder %v583, 5
    %v761 = vsel %vm760, 1, 0
    %v762 = vperm.slane %v761, 0
    %vm763 = vcmp.eq.s32.totalorder %v762, 1
    %764 = vrot.lane.b32.xlu0 %v575, 118
    %v765 = vpop.permute.xlu0 %764
    %766 = vrot.lane.b32.xlu0 %v576, 118
    %v767 = vpop.permute.xlu0 %766
    %768 = vrot.lane.b32.xlu0 %v577, 118
    %v769 = vpop.permute.xlu0 %768
    %770 = vrot.lane.b32.xlu0 %v578, 118
    %v771 = vpop.permute.xlu0 %770
    %772 = vrot.lane.b32.xlu0 %v579, 118
    %v773 = vpop.permute.xlu0 %772
    %774 = vrot.lane.b32.xlu0 %v580, 118
    %v775 = vpop.permute.xlu0 %774
    %776 = vrot.lane.b32.xlu0 %v581, 118
    %v777 = vpop.permute.xlu0 %776
    %778 = vrot.lane.b32.xlu0 %v582, 118
    %v779 = vpop.permute.xlu0 %778
    %v788 = vsel %vm763, %v765, %v752
    %v789 = vsel %vm763, %v767, %v753
    %v790 = vsel %vm763, %v769, %v754
    %v791 = vsel %vm763, %v771, %v755
    %v792 = vsel %vm763, %v773, %v756
    %v793 = vsel %vm763, %v775, %v757
    %v794 = vsel %vm763, %v777, %v758
    %v795 = vsel %vm763, %v779, %v759
    %vm796 = vcmp.eq.s32.totalorder %v583, 6
    %v797 = vsel %vm796, 1, 0
    %v798 = vperm.slane %v797, 0
    %vm799 = vcmp.eq.s32.totalorder %v798, 1
    %800 = vrot.lane.b32.xlu0 %v575, 119
    %v801 = vpop.permute.xlu0 %800
    %802 = vrot.lane.b32.xlu0 %v576, 119
    %v803 = vpop.permute.xlu0 %802
    %804 = vrot.lane.b32.xlu0 %v577, 119
    %v805 = vpop.permute.xlu0 %804
    %806 = vrot.lane.b32.xlu0 %v578, 119
    %v807 = vpop.permute.xlu0 %806
    %808 = vrot.lane.b32.xlu0 %v579, 119
    %v809 = vpop.permute.xlu0 %808
    %810 = vrot.lane.b32.xlu0 %v580, 119
    %v811 = vpop.permute.xlu0 %810
    %812 = vrot.lane.b32.xlu0 %v581, 119
    %v813 = vpop.permute.xlu0 %812
    %814 = vrot.lane.b32.xlu0 %v582, 119
    %v815 = vpop.permute.xlu0 %814
    %v824 = vsel %vm799, %v801, %v788
    %v825 = vsel %vm799, %v803, %v789
    %v826 = vsel %vm799, %v805, %v790
    %v827 = vsel %vm799, %v807, %v791
    %v828 = vsel %vm799, %v809, %v792
    %v829 = vsel %vm799, %v811, %v793
    %v830 = vsel %vm799, %v813, %v794
    %v831 = vsel %vm799, %v815, %v795
    %vm832 = vcmp.eq.s32.totalorder %v583, 7
    %v833 = vsel %vm832, 1, 0
    %v834 = vperm.slane %v833, 0
    %vm835 = vcmp.eq.s32.totalorder %v834, 1
    %836 = vrot.lane.b32.xlu0 %v575, 120
    %v837 = vpop.permute.xlu0 %836
    %838 = vrot.lane.b32.xlu0 %v576, 120
    %v839 = vpop.permute.xlu0 %838
    %840 = vrot.lane.b32.xlu0 %v577, 120
    %v841 = vpop.permute.xlu0 %840
    %842 = vrot.lane.b32.xlu0 %v578, 120
    %v843 = vpop.permute.xlu0 %842
    %844 = vrot.lane.b32.xlu0 %v579, 120
    %v845 = vpop.permute.xlu0 %844
    %846 = vrot.lane.b32.xlu0 %v580, 120
    %v847 = vpop.permute.xlu0 %846
    %848 = vrot.lane.b32.xlu0 %v581, 120
    %v849 = vpop.permute.xlu0 %848
    %850 = vrot.lane.b32.xlu0 %v582, 120
    %v851 = vpop.permute.xlu0 %850
    %v860 = vsel %vm835, %v837, %v824
    %v861 = vsel %vm835, %v839, %v825
    %v862 = vsel %vm835, %v841, %v826
    %v863 = vsel %vm835, %v843, %v827
    %v864 = vsel %vm835, %v845, %v828
    %v865 = vsel %vm835, %v847, %v829
    %v866 = vsel %vm835, %v849, %v830
    %v867 = vsel %vm835, %v851, %v831
    %vm868 = vcmp.eq.s32.totalorder %v583, 8
    %v869 = vsel %vm868, 1, 0
    %v870 = vperm.slane %v869, 0
    %vm871 = vcmp.eq.s32.totalorder %v870, 1
    %872 = vrot.lane.b32.xlu0 %v575, 121
    %v873 = vpop.permute.xlu0 %872
    %874 = vrot.lane.b32.xlu0 %v576, 121
    %v875 = vpop.permute.xlu0 %874
    %876 = vrot.lane.b32.xlu0 %v577, 121
    %v877 = vpop.permute.xlu0 %876
    %878 = vrot.lane.b32.xlu0 %v578, 121
    %v879 = vpop.permute.xlu0 %878
    %880 = vrot.lane.b32.xlu0 %v579, 121
    %v881 = vpop.permute.xlu0 %880
    %882 = vrot.lane.b32.xlu0 %v580, 121
    %v883 = vpop.permute.xlu0 %882
    %884 = vrot.lane.b32.xlu0 %v581, 121
    %v885 = vpop.permute.xlu0 %884
    %886 = vrot.lane.b32.xlu0 %v582, 121
    %v887 = vpop.permute.xlu0 %886
    %v896 = vsel %vm871, %v873, %v860
    %v897 = vsel %vm871, %v875, %v861
    %v898 = vsel %vm871, %v877, %v862
    %v899 = vsel %vm871, %v879, %v863
    %v900 = vsel %vm871, %v881, %v864
    %v901 = vsel %vm871, %v883, %v865
    %v902 = vsel %vm871, %v885, %v866
    %v903 = vsel %vm871, %v887, %v867
    %vm904 = vcmp.eq.s32.totalorder %v583, 9
    %v905 = vsel %vm904, 1, 0
    %v906 = vperm.slane %v905, 0
    %vm907 = vcmp.eq.s32.totalorder %v906, 1
    %908 = vrot.lane.b32.xlu0 %v575, 122
    %v909 = vpop.permute.xlu0 %908
    %910 = vrot.lane.b32.xlu0 %v576, 122
    %v911 = vpop.permute.xlu0 %910
    %912 = vrot.lane.b32.xlu0 %v577, 122
    %v913 = vpop.permute.xlu0 %912
    %914 = vrot.lane.b32.xlu0 %v578, 122
    %v915 = vpop.permute.xlu0 %914
    %916 = vrot.lane.b32.xlu0 %v579, 122
    %v917 = vpop.permute.xlu0 %916
    %918 = vrot.lane.b32.xlu0 %v580, 122
    %v919 = vpop.permute.xlu0 %918
    %920 = vrot.lane.b32.xlu0 %v581, 122
    %v921 = vpop.permute.xlu0 %920
    %922 = vrot.lane.b32.xlu0 %v582, 122
    %v923 = vpop.permute.xlu0 %922
    %v932 = vsel %vm907, %v909, %v896
    %v933 = vsel %vm907, %v911, %v897
    %v934 = vsel %vm907, %v913, %v898
    %v935 = vsel %vm907, %v915, %v899
    %v936 = vsel %vm907, %v917, %v900
    %v937 = vsel %vm907, %v919, %v901
    %v938 = vsel %vm907, %v921, %v902
    %v939 = vsel %vm907, %v923, %v903
    %vm940 = vcmp.eq.s32.totalorder %v583, 10
    %v941 = vsel %vm940, 1, 0
    %v942 = vperm.slane %v941, 0
    %vm943 = vcmp.eq.s32.totalorder %v942, 1
    %944 = vrot.lane.b32.xlu0 %v575, 123
    %v945 = vpop.permute.xlu0 %944
    %946 = vrot.lane.b32.xlu0 %v576, 123
    %v947 = vpop.permute.xlu0 %946
    %948 = vrot.lane.b32.xlu0 %v577, 123
    %v949 = vpop.permute.xlu0 %948
    %950 = vrot.lane.b32.xlu0 %v578, 123
    %v951 = vpop.permute.xlu0 %950
    %952 = vrot.lane.b32.xlu0 %v579, 123
    %v953 = vpop.permute.xlu0 %952
    %954 = vrot.lane.b32.xlu0 %v580, 123
    %v955 = vpop.permute.xlu0 %954
    %956 = vrot.lane.b32.xlu0 %v581, 123
    %v957 = vpop.permute.xlu0 %956
    %958 = vrot.lane.b32.xlu0 %v582, 123
    %v959 = vpop.permute.xlu0 %958
    %v968 = vsel %vm943, %v945, %v932
    %v969 = vsel %vm943, %v947, %v933
    %v970 = vsel %vm943, %v949, %v934
    %v971 = vsel %vm943, %v951, %v935
    %v972 = vsel %vm943, %v953, %v936
    %v973 = vsel %vm943, %v955, %v937
    %v974 = vsel %vm943, %v957, %v938
    %v975 = vsel %vm943, %v959, %v939
    %vm976 = vcmp.eq.s32.totalorder %v583, 11
    %v977 = vsel %vm976, 1, 0
    %v978 = vperm.slane %v977, 0
    %vm979 = vcmp.eq.s32.totalorder %v978, 1
    %980 = vrot.lane.b32.xlu0 %v575, 124
    %v981 = vpop.permute.xlu0 %980
    %982 = vrot.lane.b32.xlu0 %v576, 124
    %v983 = vpop.permute.xlu0 %982
    %984 = vrot.lane.b32.xlu0 %v577, 124
    %v985 = vpop.permute.xlu0 %984
    %986 = vrot.lane.b32.xlu0 %v578, 124
    %v987 = vpop.permute.xlu0 %986
    %988 = vrot.lane.b32.xlu0 %v579, 124
    %v989 = vpop.permute.xlu0 %988
    %990 = vrot.lane.b32.xlu0 %v580, 124
    %v991 = vpop.permute.xlu0 %990
    %992 = vrot.lane.b32.xlu0 %v581, 124
    %v993 = vpop.permute.xlu0 %992
    %994 = vrot.lane.b32.xlu0 %v582, 124
    %v995 = vpop.permute.xlu0 %994
    %v1004 = vsel %vm979, %v981, %v968
    %v1005 = vsel %vm979, %v983, %v969
    %v1006 = vsel %vm979, %v985, %v970
    %v1007 = vsel %vm979, %v987, %v971
    %v1008 = vsel %vm979, %v989, %v972
    %v1009 = vsel %vm979, %v991, %v973
    %v1010 = vsel %vm979, %v993, %v974
    %v1011 = vsel %vm979, %v995, %v975
    %vm1012 = vcmp.eq.s32.totalorder %v583, 12
    %v1013 = vsel %vm1012, 1, 0
    %v1014 = vperm.slane %v1013, 0
    %vm1015 = vcmp.eq.s32.totalorder %v1014, 1
    %1016 = vrot.lane.b32.xlu0 %v575, 125
    %v1017 = vpop.permute.xlu0 %1016
    %1018 = vrot.lane.b32.xlu0 %v576, 125
    %v1019 = vpop.permute.xlu0 %1018
    %1020 = vrot.lane.b32.xlu0 %v577, 125
    %v1021 = vpop.permute.xlu0 %1020
    %1022 = vrot.lane.b32.xlu0 %v578, 125
    %v1023 = vpop.permute.xlu0 %1022
    %1024 = vrot.lane.b32.xlu0 %v579, 125
    %v1025 = vpop.permute.xlu0 %1024
    %1026 = vrot.lane.b32.xlu0 %v580, 125
    %v1027 = vpop.permute.xlu0 %1026
    %1028 = vrot.lane.b32.xlu0 %v581, 125
    %v1029 = vpop.permute.xlu0 %1028
    %1030 = vrot.lane.b32.xlu0 %v582, 125
    %v1031 = vpop.permute.xlu0 %1030
    %v1040 = vsel %vm1015, %v1017, %v1004
    %v1041 = vsel %vm1015, %v1019, %v1005
    %v1042 = vsel %vm1015, %v1021, %v1006
    %v1043 = vsel %vm1015, %v1023, %v1007
    %v1044 = vsel %vm1015, %v1025, %v1008
    %v1045 = vsel %vm1015, %v1027, %v1009
    %v1046 = vsel %vm1015, %v1029, %v1010
    %v1047 = vsel %vm1015, %v1031, %v1011
    %vm1048 = vcmp.eq.s32.totalorder %v583, 13
    %v1049 = vsel %vm1048, 1, 0
    %v1050 = vperm.slane %v1049, 0
    %vm1051 = vcmp.eq.s32.totalorder %v1050, 1
    %1052 = vrot.lane.b32.xlu0 %v575, 126
    %v1053 = vpop.permute.xlu0 %1052
    %1054 = vrot.lane.b32.xlu0 %v576, 126
    %v1055 = vpop.permute.xlu0 %1054
    %1056 = vrot.lane.b32.xlu0 %v577, 126
    %v1057 = vpop.permute.xlu0 %1056
    %1058 = vrot.lane.b32.xlu0 %v578, 126
    %v1059 = vpop.permute.xlu0 %1058
    %1060 = vrot.lane.b32.xlu0 %v579, 126
    %v1061 = vpop.permute.xlu0 %1060
    %1062 = vrot.lane.b32.xlu0 %v580, 126
    %v1063 = vpop.permute.xlu0 %1062
    %1064 = vrot.lane.b32.xlu0 %v581, 126
    %v1065 = vpop.permute.xlu0 %1064
    %1066 = vrot.lane.b32.xlu0 %v582, 126
    %v1067 = vpop.permute.xlu0 %1066
    %v1076 = vsel %vm1051, %v1053, %v1040
    %v1077 = vsel %vm1051, %v1055, %v1041
    %v1078 = vsel %vm1051, %v1057, %v1042
    %v1079 = vsel %vm1051, %v1059, %v1043
    %v1080 = vsel %vm1051, %v1061, %v1044
    %v1081 = vsel %vm1051, %v1063, %v1045
    %v1082 = vsel %vm1051, %v1065, %v1046
    %v1083 = vsel %vm1051, %v1067, %v1047
    %vm1084 = vcmp.eq.s32.totalorder %v583, 14
    %v1085 = vsel %vm1084, 1, 0
    %v1086 = vperm.slane %v1085, 0
    %vm1087 = vcmp.eq.s32.totalorder %v1086, 1
    %1088 = vrot.lane.b32.xlu0 %v575, 127
    %v1089 = vpop.permute.xlu0 %1088
    %1090 = vrot.lane.b32.xlu0 %v576, 127
    %v1091 = vpop.permute.xlu0 %1090
    %1092 = vrot.lane.b32.xlu0 %v577, 127
    %v1093 = vpop.permute.xlu0 %1092
    %1094 = vrot.lane.b32.xlu0 %v578, 127
    %v1095 = vpop.permute.xlu0 %1094
    %1096 = vrot.lane.b32.xlu0 %v579, 127
    %v1097 = vpop.permute.xlu0 %1096
    %1098 = vrot.lane.b32.xlu0 %v580, 127
    %v1099 = vpop.permute.xlu0 %1098
    %1100 = vrot.lane.b32.xlu0 %v581, 127
    %v1101 = vpop.permute.xlu0 %1100
    %1102 = vrot.lane.b32.xlu0 %v582, 127
    %v1103 = vpop.permute.xlu0 %1102
    %v1112 = vsel %vm1087, %v1089, %v1076
    %v1113 = vsel %vm1087, %v1091, %v1077
    %v1114 = vsel %vm1087, %v1093, %v1078
    %v1115 = vsel %vm1087, %v1095, %v1079
    %v1116 = vsel %vm1087, %v1097, %v1080
    %v1117 = vsel %vm1087, %v1099, %v1081
    %v1118 = vsel %vm1087, %v1101, %v1082
    %v1119 = vsel %vm1087, %v1103, %v1083
    %vm1120 = vcmp.eq.s32.totalorder %v583, 15
    %v1121 = vsel %vm1120, 1, 0
    %v1122 = vperm.slane %v1121, 0
    %vm1123 = vcmp.eq.s32.totalorder %v1122, 1
    %v1124 = vsel %vm1123, %v575, %v1112
    %v1125 = vsel %vm1123, %v576, %v1113
    %v1126 = vsel %vm1123, %v577, %v1114
    %v1127 = vsel %vm1123, %v578, %v1115
    %v1128 = vsel %vm1123, %v579, %v1116
    %v1129 = vsel %vm1123, %v580, %v1117
    %v1130 = vsel %vm1123, %v581, %v1118
    %v1131 = vsel %vm1123, %v582, %v1119
    %1132 = vrot.lane.b32.xlu0 %v137, 124
    %v1133 = vpop.permute.xlu0 %1132
    %1134 = vrot.lane.b32.xlu0 %v138, 124
    %v1135 = vpop.permute.xlu0 %1134
    %1136 = vrot.lane.b32.xlu0 %v139, 124
    %v1137 = vpop.permute.xlu0 %1136
    %1138 = vrot.lane.b32.xlu0 %v140, 124
    %v1139 = vpop.permute.xlu0 %1138
    %v1144 = vadd.f32 %v533, %v1133
    %v1145 = vadd.f32 %v534, %v1135
    %v1146 = vadd.f32 %v535, %v1137
    %v1147 = vadd.f32 %v536, %v1139
    %v1148 = vadd.f32 %v1124, %v1133
    %v1149 = vadd.f32 %v1125, %v1135
    %v1150 = vadd.f32 %v1126, %v1137
    %v1151 = vadd.f32 %v1127, %v1139
    %v1152 = vadd.f32 %v537, %v1133
    %v1153 = vadd.f32 %v538, %v1135
    %v1154 = vadd.f32 %v539, %v1137
    %v1155 = vadd.f32 %v540, %v1139
    %v1156 = vadd.f32 %v1128, %v1133
    %v1157 = vadd.f32 %v1129, %v1135
    %v1158 = vadd.f32 %v1130, %v1137
    %v1159 = vadd.f32 %v1131, %v1139
    %v1160 = vrot.slane %v1146, 4
    %vm1161 = vcmask 1047556
    %v1162 = vsel %vm1161, %v1160, %v1144
    %v1163 = vrot.slane %v1144, 4
    %v1164 = vsel %vm1161, %v1146, %v1163
    %v1166 = vunpack.c.l.s4 1983009808
    %v1167 = vunpack.c.0.s8 %v1166
    %v1168 = vperm.slane %v1162, %v1167
    %v1170 = vunpack.c.l.s4 1983009808
    %v1171 = vunpack.c.0.s8 %v1170
    %v1172 = vperm.slane %v1164, %v1171
    %v1173 = vrot.slane %v1147, 4
    %v1174 = vsel %vm1161, %v1173, %v1145
    %v1175 = vrot.slane %v1145, 4
    %v1176 = vsel %vm1161, %v1147, %v1175
    %v1178 = vunpack.c.l.s4 1983009808
    %v1179 = vunpack.c.0.s8 %v1178
    %v1180 = vperm.slane %v1174, %v1179
    %v1182 = vunpack.c.l.s4 1983009808
    %v1183 = vunpack.c.0.s8 %v1182
    %v1184 = vperm.slane %v1176, %v1183
    %v1185 = vrot.slane %v1150, 4
    %v1186 = vsel %vm1161, %v1185, %v1148
    %v1187 = vrot.slane %v1148, 4
    %v1188 = vsel %vm1161, %v1150, %v1187
    %v1190 = vunpack.c.l.s4 1983009808
    %v1191 = vunpack.c.0.s8 %v1190
    %v1192 = vperm.slane %v1186, %v1191
    %v1194 = vunpack.c.l.s4 1983009808
    %v1195 = vunpack.c.0.s8 %v1194
    %v1196 = vperm.slane %v1188, %v1195
    %v1197 = vrot.slane %v1151, 4
    %v1198 = vsel %vm1161, %v1197, %v1149
    %v1199 = vrot.slane %v1149, 4
    %v1200 = vsel %vm1161, %v1151, %v1199
    %v1202 = vunpack.c.l.s4 1983009808
    %v1203 = vunpack.c.0.s8 %v1202
    %v1204 = vperm.slane %v1198, %v1203
    %v1206 = vunpack.c.l.s4 1983009808
    %v1207 = vunpack.c.0.s8 %v1206
    %v1208 = vperm.slane %v1200, %v1207
    %v1209 = vrot.slane %v1180, 4
    %v1210 = vsel %vm1161, %v1209, %v1168
    %v1211 = vrot.slane %v1168, 4
    %v1212 = vsel %vm1161, %v1180, %v1211
    %v1214 = vunpack.c.l.s4 1934713408
    %v1215 = vunpack.c.0.s8 %v1214
    %v1216 = vperm.slane %v1210, %v1215
    %v1218 = vunpack.c.l.s4 1934713408
    %v1219 = vunpack.c.0.s8 %v1218
    %v1220 = vperm.slane %v1212, %v1219
    %v1221 = vrot.slane %v1184, 4
    %v1222 = vsel %vm1161, %v1221, %v1172
    %v1223 = vrot.slane %v1172, 4
    %v1224 = vsel %vm1161, %v1184, %v1223
    %v1226 = vunpack.c.l.s4 1934713408
    %v1227 = vunpack.c.0.s8 %v1226
    %v1228 = vperm.slane %v1222, %v1227
    %v1230 = vunpack.c.l.s4 1934713408
    %v1231 = vunpack.c.0.s8 %v1230
    %v1232 = vperm.slane %v1224, %v1231
    %v1233 = vrot.slane %v1204, 4
    %v1234 = vsel %vm1161, %v1233, %v1192
    %v1235 = vrot.slane %v1192, 4
    %v1236 = vsel %vm1161, %v1204, %v1235
    %v1238 = vunpack.c.l.s4 1934713408
    %v1239 = vunpack.c.0.s8 %v1238
    %v1240 = vperm.slane %v1234, %v1239
    %v1242 = vunpack.c.l.s4 1934713408
    %v1243 = vunpack.c.0.s8 %v1242
    %v1244 = vperm.slane %v1236, %v1243
    %v1245 = vrot.slane %v1208, 4
    %v1246 = vsel %vm1161, %v1245, %v1196
    %v1247 = vrot.slane %v1196, 4
    %v1248 = vsel %vm1161, %v1208, %v1247
    %v1250 = vunpack.c.l.s4 1934713408
    %v1251 = vunpack.c.0.s8 %v1250
    %v1252 = vperm.slane %v1246, %v1251
    %v1254 = vunpack.c.l.s4 1934713408
    %v1255 = vunpack.c.0.s8 %v1254
    %v1256 = vperm.slane %v1248, %v1255
    %v1257 = vrot.slane %v1240, 4
    %v1258 = vsel %vm1161, %v1257, %v1216
    %v1259 = vrot.slane %v1216, 4
    %v1260 = vsel %vm1161, %v1240, %v1259
    %v1261 = vrot.slane %v1244, 4
    %v1262 = vsel %vm1161, %v1261, %v1220
    %v1263 = vrot.slane %v1220, 4
    %v1264 = vsel %vm1161, %v1244, %v1263
    %v1265 = vrot.slane %v1252, 4
    %v1266 = vsel %vm1161, %v1265, %v1228
    %v1267 = vrot.slane %v1228, 4
    %v1268 = vsel %vm1161, %v1252, %v1267
    %v1269 = vrot.slane %v1256, 4
    %v1270 = vsel %vm1161, %v1269, %v1232
    %v1271 = vrot.slane %v1232, 4
    %v1272 = vsel %vm1161, %v1256, %v1271
    %v1273 = vrot.slane %v1154, 4
    %v1274 = vsel %vm1161, %v1273, %v1152
    %v1275 = vrot.slane %v1152, 4
    %v1276 = vsel %vm1161, %v1154, %v1275
    %v1278 = vunpack.c.l.s4 1983009808
    %v1279 = vunpack.c.0.s8 %v1278
    %v1280 = vperm.slane %v1274, %v1279
    %v1282 = vunpack.c.l.s4 1983009808
    %v1283 = vunpack.c.0.s8 %v1282
    %v1284 = vperm.slane %v1276, %v1283
    %v1285 = vrot.slane %v1155, 4
    %v1286 = vsel %vm1161, %v1285, %v1153
    %v1287 = vrot.slane %v1153, 4
    %v1288 = vsel %vm1161, %v1155, %v1287
    %v1290 = vunpack.c.l.s4 1983009808
    %v1291 = vunpack.c.0.s8 %v1290
    %v1292 = vperm.slane %v1286, %v1291
    %v1294 = vunpack.c.l.s4 1983009808
    %v1295 = vunpack.c.0.s8 %v1294
    %v1296 = vperm.slane %v1288, %v1295
    %v1297 = vrot.slane %v1158, 4
    %v1298 = vsel %vm1161, %v1297, %v1156
    %v1299 = vrot.slane %v1156, 4
    %v1300 = vsel %vm1161, %v1158, %v1299
    %v1302 = vunpack.c.l.s4 1983009808
    %v1303 = vunpack.c.0.s8 %v1302
    %v1304 = vperm.slane %v1298, %v1303
    %v1306 = vunpack.c.l.s4 1983009808
    %v1307 = vunpack.c.0.s8 %v1306
    %v1308 = vperm.slane %v1300, %v1307
    %v1309 = vrot.slane %v1159, 4
    %v1310 = vsel %vm1161, %v1309, %v1157
    %v1311 = vrot.slane %v1157, 4
    %v1312 = vsel %vm1161, %v1159, %v1311
    %v1314 = vunpack.c.l.s4 1983009808
    %v1315 = vunpack.c.0.s8 %v1314
    %v1316 = vperm.slane %v1310, %v1315
    %v1318 = vunpack.c.l.s4 1983009808
    %v1319 = vunpack.c.0.s8 %v1318
    %v1320 = vperm.slane %v1312, %v1319
    %v1321 = vrot.slane %v1292, 4
    %v1322 = vsel %vm1161, %v1321, %v1280
    %v1323 = vrot.slane %v1280, 4
    %v1324 = vsel %vm1161, %v1292, %v1323
    %v1326 = vunpack.c.l.s4 1934713408
    %v1327 = vunpack.c.0.s8 %v1326
    %v1328 = vperm.slane %v1322, %v1327
    %v1330 = vunpack.c.l.s4 1934713408
    %v1331 = vunpack.c.0.s8 %v1330
    %v1332 = vperm.slane %v1324, %v1331
    %v1333 = vrot.slane %v1296, 4
    %v1334 = vsel %vm1161, %v1333, %v1284
    %v1335 = vrot.slane %v1284, 4
    %v1336 = vsel %vm1161, %v1296, %v1335
    %v1338 = vunpack.c.l.s4 1934713408
    %v1339 = vunpack.c.0.s8 %v1338
    %v1340 = vperm.slane %v1334, %v1339
    %v1342 = vunpack.c.l.s4 1934713408
    %v1343 = vunpack.c.0.s8 %v1342
    %v1344 = vperm.slane %v1336, %v1343
    %v1345 = vrot.slane %v1316, 4
    %v1346 = vsel %vm1161, %v1345, %v1304
    %v1347 = vrot.slane %v1304, 4
    %v1348 = vsel %vm1161, %v1316, %v1347
    %v1350 = vunpack.c.l.s4 1934713408
    %v1351 = vunpack.c.0.s8 %v1350
    %v1352 = vperm.slane %v1346, %v1351
    %v1354 = vunpack.c.l.s4 1934713408
    %v1355 = vunpack.c.0.s8 %v1354
    %v1356 = vperm.slane %v1348, %v1355
    %v1357 = vrot.slane %v1320, 4
    %v1358 = vsel %vm1161, %v1357, %v1308
    %v1359 = vrot.slane %v1308, 4
    %v1360 = vsel %vm1161, %v1320, %v1359
    %v1362 = vunpack.c.l.s4 1934713408
    %v1363 = vunpack.c.0.s8 %v1362
    %v1364 = vperm.slane %v1358, %v1363
    %v1366 = vunpack.c.l.s4 1934713408
    %v1367 = vunpack.c.0.s8 %v1366
    %v1368 = vperm.slane %v1360, %v1367
    %v1369 = vrot.slane %v1352, 4
    %v1370 = vsel %vm1161, %v1369, %v1328
    %v1371 = vrot.slane %v1328, 4
    %v1372 = vsel %vm1161, %v1352, %v1371
    %v1373 = vrot.slane %v1356, 4
    %v1374 = vsel %vm1161, %v1373, %v1332
    %v1375 = vrot.slane %v1332, 4
    %v1376 = vsel %vm1161, %v1356, %v1375
    %v1377 = vrot.slane %v1364, 4
    %v1378 = vsel %vm1161, %v1377, %v1340
    %v1379 = vrot.slane %v1340, 4
    %v1380 = vsel %vm1161, %v1364, %v1379
    %v1381 = vrot.slane %v1368, 4
    %v1382 = vsel %vm1161, %v1381, %v1344
    %v1383 = vrot.slane %v1344, 4
    %v1384 = vsel %vm1161, %v1368, %v1383
    %vm1385 = vcmask 424960
    %1386 = vst.msk [vmem:[#allocation7] sm:$0xff] %vm1385, %v1258
    %1387 = vst.msk [vmem:[#allocation7 + $0x8] sm:$0xff] %vm1385, %v1370
    %1388 = vst.msk [vmem:[#allocation7 + $0x10] sm:$0xff] %vm1385, %v1260
    %1389 = vst.msk [vmem:[#allocation7 + $0x18] sm:$0xff] %vm1385, %v1372
    %1390 = vst.msk [vmem:[#allocation7 + $0x20] sm:$0xff] %vm1385, %v1262
    %1391 = vst.msk [vmem:[#allocation7 + $0x28] sm:$0xff] %vm1385, %v1374
    %1392 = vst.msk [vmem:[#allocation7 + $0x30] sm:$0xff] %vm1385, %v1264
    %1393 = vst.msk [vmem:[#allocation7 + $0x38] sm:$0xff] %vm1385, %v1376
    %1394 = vst.msk [vmem:[#allocation7 + $0x40] sm:$0xff] %vm1385, %v1266
    %1395 = vst.msk [vmem:[#allocation7 + $0x48] sm:$0xff] %vm1385, %v1378
    %1396 = vst.msk [vmem:[#allocation7 + $0x50] sm:$0xff] %vm1385, %v1268
    %1397 = vst.msk [vmem:[#allocation7 + $0x58] sm:$0xff] %vm1385, %v1380
    %1398 = vst.msk [vmem:[#allocation7 + $0x60] sm:$0xff] %vm1385, %v1270
    %1399 = vst.msk [vmem:[#allocation7 + $0x68] sm:$0xff] %vm1385, %v1382
    %1400 = vst.msk [vmem:[#allocation7 + $0x70] sm:$0xff] %vm1385, %v1272
    %1401 = vst.msk [vmem:[#allocation7 + $0x78] sm:$0xff] %vm1385, %v1384
    // Predicated region
    $region18: #{tpu_custom_call.1} parent=1 // pred_check
      _
    $region19: #{tpu_custom_call.1} parent=1 // pred_check_branch
      %1403 = sbr.rel (0) target = $region21
    $region20: #{tpu_custom_call.1} parent=1 // pred_region
      %1405 = vsyncadd [#allocation4], 0
      %s1406 = sshll.u32 [#allocation7], 4
      %s1407 = int_to_ptr.vmem [resolvable:$true] %s1406
      %s1408 = sshll.u32 %s2, 4
      %s1409 = int_to_ptr.hbm [resolvable:$true] %s1408
      %1414 = dma.vmem_to_hbm [thread:$0]  %s1407, 2048, %s1409, [#allocation4], 128, 128, 8
    $region21: #{tpu_custom_call.1} parent=1 // pred_fallthru
      _
    // Predicated region
    $region22: #{tpu_custom_call.1} parent=1 // pred_check
      _
    $region23: #{tpu_custom_call.1} parent=1 // pred_check_branch
      %1416 = sbr.rel (0) target = $region25
    $region24: #{tpu_custom_call.1} parent=1 // pred_region
      %1418 = dma.done [#allocation4], 2048
    $region25: #{tpu_custom_call.1} parent=1 // pred_fallthru
      _
    %1419 = vsyncpa [#allocation3], 1
    %1420 = vsyncpa [#allocation6], 1
    %1421 = vsyncpa [#allocation4], 1

// kernel: tpu_custom_call.1
$region0: #{tpu_custom_call.1}
  #allocation0 [shape = 'u32[]', space=smem, size = 0x4, offset = 0x4, fixed_abs, tag = 'smem constant byte address 0x4 - core index']
  #allocation1 [shape = 'u32[72,128]{1,0:T(1,128)}', space=vmem, size = 0x9000, scoped, tag = 'internal scratch']
  %s0 = inlined_call_operand.hbm [shape: s32[1,52], index: 0, kind: input, shape index: {}]
  %s1 = inlined_call_operand.hbm [shape: f32[8,64], index: 1, kind: input, shape index: {}]
  %s2 = inlined_call_operand.hbm [shape: f32[16,8,52], index: 2, kind: output, shape index: {}]
  %s3 = sld [smem:[#allocation0]]
  $region26: #{tpu_custom_call.1} parent=0
    _
  %s5 = ssub.s32 1, %s3
  %s6 = scalar_select 0, %s5, %s3
  $region1: #{tpu_custom_call.1} parent=0
    #allocation2 [shape = 'u8[512]{0}', space=vmem, size = 0x400, scoped, tag = 'input window, operand 0, single buffered']
    #allocation3 [shape = 's32[1]{0}', space=sflag, size = 0x4, scoped, tag = 'scoped memory for tpu_custom_call.1']
    #allocation4 [shape = 's32[1]{0}', space=sflag, size = 0x4, scoped, tag = 'scoped memory for tpu_custom_call.1']
    #allocation5 [shape = 'u8[4096]{0}', space=vmem, size = 0x1000, scoped, tag = 'input window, operand 1, single buffered']
    #allocation6 [shape = 's32[1]{0}', space=sflag, size = 0x4, scoped, tag = 'scoped memory for tpu_custom_call.1']
    #allocation7 [shape = 'u8[65536]{0}', space=vmem, size = 0x10000, scoped, tag = 'output window, operand 0, single buffered']
    %7 = vsyncpa [#allocation3], 0
    %8 = vsyncpa [#allocation6], 0
    %9 = vsyncpa [#allocation4], 0
    // Predicated region
    $region2: #{tpu_custom_call.1} parent=1 // pred_check
      _
    $region3: #{tpu_custom_call.1} parent=1 // pred_check_branch
      %11 = sbr.rel (0) target = $region5
    $region4: #{tpu_custom_call.1} parent=1 // pred_region
      %13 = vsyncadd [#allocation3], 0
      %s15 = sshll.u32 %s0, 4
      %s16 = int_to_ptr.hbm [resolvable:$true] %s15
      %s17 = sshll.u32 [#allocation2], 4
      %s18 = int_to_ptr.vmem [resolvable:$true] %s17
      %20 = dma.hbm_to_vmem [thread:$0]  %s16, 16, %s18, [#allocation3]
    $region5: #{tpu_custom_call.1} parent=1 // pred_fallthru
      _
    // Predicated region
    $region6: #{tpu_custom_call.1} parent=1 // pred_check
      _
    $region7: #{tpu_custom_call.1} parent=1 // pred_check_branch
      %22 = sbr.rel (0) target = $region9
    $region8: #{tpu_custom_call.1} parent=1 // pred_region
      %24 = vsyncadd [#allocation6], 0
      %s26 = sshll.u32 %s1, 4
      %s27 = int_to_ptr.hbm [resolvable:$true] %s26
      %s28 = sshll.u32 [#allocation5], 4
      %s29 = int_to_ptr.vmem [resolvable:$true] %s28
      %31 = dma.hbm_to_vmem [thread:$0]  %s27, 128, %s29, [#allocation6]
    $region9: #{tpu_custom_call.1} parent=1 // pred_fallthru
      _
    // Predicated region
    $region10: #{tpu_custom_call.1} parent=1 // pred_check
      _
    $region11: #{tpu_custom_call.1} parent=1 // pred_check_branch
      %33 = sbr.rel (0) target = $region13
    $region12: #{tpu_custom_call.1} parent=1 // pred_region
      %35 = dma.done [#allocation3], 16
    $region13: #{tpu_custom_call.1} parent=1 // pred_fallthru
      _
    // Predicated region
    $region14: #{tpu_custom_call.1} parent=1 // pred_check
      _
    $region15: #{tpu_custom_call.1} parent=1 // pred_check_branch
      %37 = sbr.rel (0) target = $region17
    $region16: #{tpu_custom_call.1} parent=1 // pred_region
      %39 = dma.done [#allocation6], 128
    $region17: #{tpu_custom_call.1} parent=1 // pred_fallthru
      _
    %v40 = vld [vmem:[#allocation5] sm:$0xff]
    %42 = vrot.lane.b32.xlu0 %v40, 1
    %v43 = vpop.permute.xlu0 %42
    %v45 = vsub.f32 %v40, %v43
    %46 = vrot.lane.b32.xlu0 %v40, 2
    %v47 = vpop.permute.xlu0 %46
    %v49 = vsub.f32 %v40, %v47
    %50 = vrot.lane.b32.xlu0 %v40, 4
    %v51 = vpop.permute.xlu0 %50
    %v53 = vsub.f32 %v40, %v51
    %v54 = vmul.f32 %v40, 2.0
    %56 = vrot.lane.b32.xlu0 %v54, 1
    %v57 = vpop.permute.xlu0 %56
    %v59 = vsub.f32 %v40, %v57
    %v60 = vadd.f32 %v59, %v47
    %65 = vrot.lane.b32.xlu0 %v45, 127
    %v66 = vpop.permute.xlu0 %65
    %67 = vrot.lane.b32.xlu0 %v49, 127
    %v68 = vpop.permute.xlu0 %67
    %69 = vrot.lane.b32.xlu0 %v53, 127
    %v70 = vpop.permute.xlu0 %69
    %71 = vrot.lane.b32.xlu0 %v60, 127
    %v72 = vpop.permute.xlu0 %71
    %v77 = vadd.f32 %v45, %v66
    %v78 = vadd.f32 %v49, %v68
    %v79 = vadd.f32 %v53, %v70
    %v80 = vadd.f32 %v60, %v72
    %85 = vrot.lane.b32.xlu0 %v77, 126
    %v86 = vpop.permute.xlu0 %85
    %87 = vrot.lane.b32.xlu0 %v78, 126
    %v88 = vpop.permute.xlu0 %87
    %89 = vrot.lane.b32.xlu0 %v79, 126
    %v90 = vpop.permute.xlu0 %89
    %91 = vrot.lane.b32.xlu0 %v80, 126
    %v92 = vpop.permute.xlu0 %91
    %v97 = vadd.f32 %v77, %v86
    %v98 = vadd.f32 %v78, %v88
    %v99 = vadd.f32 %v79, %v90
    %v100 = vadd.f32 %v80, %v92
    %105 = vrot.lane.b32.xlu0 %v97, 124
    %v106 = vpop.permute.xlu0 %105
    %107 = vrot.lane.b32.xlu0 %v98, 124
    %v108 = vpop.permute.xlu0 %107
    %109 = vrot.lane.b32.xlu0 %v99, 124
    %v110 = vpop.permute.xlu0 %109
    %111 = vrot.lane.b32.xlu0 %v100, 124
    %v112 = vpop.permute.xlu0 %111
    %v117 = vadd.f32 %v97, %v106
    %v118 = vadd.f32 %v98, %v108
    %v119 = vadd.f32 %v99, %v110
    %v120 = vadd.f32 %v100, %v112
    %121 = vrot.lane.b32.xlu0 %v45, 120
    %v122 = vpop.permute.xlu0 %121
    %123 = vrot.lane.b32.xlu0 %v49, 120
    %v124 = vpop.permute.xlu0 %123
    %125 = vrot.lane.b32.xlu0 %v53, 120
    %v126 = vpop.permute.xlu0 %125
    %127 = vrot.lane.b32.xlu0 %v60, 120
    %v128 = vpop.permute.xlu0 %127
    %v133 = vadd.f32 %v117, %v122
    %v134 = vadd.f32 %v118, %v124
    %v135 = vadd.f32 %v119, %v126
    %v136 = vadd.f32 %v120, %v128
    %v137 = vmul.f32 %v133, 0.11111111
    %v138 = vmul.f32 %v134, 0.11111111
    %v139 = vmul.f32 %v135, 0.11111111
    %v140 = vmul.f32 %v136, 0.11111111
    %145 = vrot.lane.b32.xlu0 %v137, 127
    %v146 = vpop.permute.xlu0 %145
    %147 = vrot.lane.b32.xlu0 %v138, 127
    %v148 = vpop.permute.xlu0 %147
    %149 = vrot.lane.b32.xlu0 %v139, 127
    %v150 = vpop.permute.xlu0 %149
    %151 = vrot.lane.b32.xlu0 %v140, 127
    %v152 = vpop.permute.xlu0 %151
    %v157 = vadd.f32 %v137, %v146
    %v158 = vadd.f32 %v138, %v148
    %v159 = vadd.f32 %v139, %v150
    %v160 = vadd.f32 %v140, %v152
    %165 = vrot.lane.b32.xlu0 %v157, 126
    %v166 = vpop.permute.xlu0 %165
    %167 = vrot.lane.b32.xlu0 %v158, 126
    %v168 = vpop.permute.xlu0 %167
    %169 = vrot.lane.b32.xlu0 %v159, 126
    %v170 = vpop.permute.xlu0 %169
    %171 = vrot.lane.b32.xlu0 %v160, 126
    %v172 = vpop.permute.xlu0 %171
    %v177 = vadd.f32 %v157, %v166
    %v178 = vadd.f32 %v158, %v168
    %v179 = vadd.f32 %v159, %v170
    %v180 = vadd.f32 %v160, %v172
    %185 = vrot.lane.b32.xlu0 %v177, 124
    %v186 = vpop.permute.xlu0 %185
    %187 = vrot.lane.b32.xlu0 %v178, 124
    %v188 = vpop.permute.xlu0 %187
    %189 = vrot.lane.b32.xlu0 %v179, 124
    %v190 = vpop.permute.xlu0 %189
    %191 = vrot.lane.b32.xlu0 %v180, 124
    %v192 = vpop.permute.xlu0 %191
    %v197 = vadd.f32 %v177, %v186
    %v198 = vadd.f32 %v178, %v188
    %v199 = vadd.f32 %v179, %v190
    %v200 = vadd.f32 %v180, %v192
    %201 = vrot.lane.b32.xlu0 %v137, 120
    %v202 = vpop.permute.xlu0 %201
    %203 = vrot.lane.b32.xlu0 %v138, 120
    %v204 = vpop.permute.xlu0 %203
    %205 = vrot.lane.b32.xlu0 %v139, 120
    %v206 = vpop.permute.xlu0 %205
    %207 = vrot.lane.b32.xlu0 %v140, 120
    %v208 = vpop.permute.xlu0 %207
    %v213 = vadd.f32 %v197, %v202
    %v214 = vadd.f32 %v198, %v204
    %v215 = vadd.f32 %v199, %v206
    %v216 = vadd.f32 %v200, %v208
    %v217 = vmul.f32 %v213, 0.11111111
    %v218 = vmul.f32 %v214, 0.11111111
    %v219 = vmul.f32 %v215, 0.11111111
    %v220 = vmul.f32 %v216, 0.11111111
    %v221 = vmax.f32 %v137, %v146
    %v222 = vmax.f32 %v138, %v148
    %v223 = vmax.f32 %v139, %v150
    %v224 = vmax.f32 %v140, %v152
    %229 = vrot.lane.b32.xlu0 %v221, 126
    %v230 = vpop.permute.xlu0 %229
    %231 = vrot.lane.b32.xlu0 %v222, 126
    %v232 = vpop.permute.xlu0 %231
    %233 = vrot.lane.b32.xlu0 %v223, 126
    %v234 = vpop.permute.xlu0 %233
    %235 = vrot.lane.b32.xlu0 %v224, 126
    %v236 = vpop.permute.xlu0 %235
    %v241 = vmax.f32 %v221, %v230
    %v242 = vmax.f32 %v222, %v232
    %v243 = vmax.f32 %v223, %v234
    %v244 = vmax.f32 %v224, %v236
    %249 = vrot.lane.b32.xlu0 %v241, 124
    %v250 = vpop.permute.xlu0 %249
    %251 = vrot.lane.b32.xlu0 %v242, 124
    %v252 = vpop.permute.xlu0 %251
    %253 = vrot.lane.b32.xlu0 %v243, 124
    %v254 = vpop.permute.xlu0 %253
    %255 = vrot.lane.b32.xlu0 %v244, 124
    %v256 = vpop.permute.xlu0 %255
    %v261 = vmax.f32 %v241, %v250
    %v262 = vmax.f32 %v242, %v252
    %v263 = vmax.f32 %v243, %v254
    %v264 = vmax.f32 %v244, %v256
    %v265 = vmax.f32 %v261, %v202
    %v266 = vmax.f32 %v262, %v204
    %v267 = vmax.f32 %v263, %v206
    %v268 = vmax.f32 %v264, %v208
    %277 = vrot.lane.b32.xlu0 %v217, 124
    %v278 = vpop.permute.xlu0 %277
    %279 = vrot.lane.b32.xlu0 %v218, 124
    %v280 = vpop.permute.xlu0 %279
    %281 = vrot.lane.b32.xlu0 %v219, 124
    %v282 = vpop.permute.xlu0 %281
    %283 = vrot.lane.b32.xlu0 %v220, 124
    %v284 = vpop.permute.xlu0 %283
    %285 = vrot.lane.b32.xlu0 %v265, 124
    %v286 = vpop.permute.xlu0 %285
    %287 = vrot.lane.b32.xlu0 %v266, 124
    %v288 = vpop.permute.xlu0 %287
    %289 = vrot.lane.b32.xlu0 %v267, 124
    %v290 = vpop.permute.xlu0 %289
    %291 = vrot.lane.b32.xlu0 %v268, 124
    %v292 = vpop.permute.xlu0 %291
    %301 = vrot.lane.b32.xlu0 %v217, 125
    %v302 = vpop.permute.xlu0 %301
    %303 = vrot.lane.b32.xlu0 %v218, 125
    %v304 = vpop.permute.xlu0 %303
    %305 = vrot.lane.b32.xlu0 %v219, 125
    %v306 = vpop.permute.xlu0 %305
    %307 = vrot.lane.b32.xlu0 %v220, 125
    %v308 = vpop.permute.xlu0 %307
    %309 = vrot.lane.b32.xlu0 %v265, 125
    %v310 = vpop.permute.xlu0 %309
    %311 = vrot.lane.b32.xlu0 %v266, 125
    %v312 = vpop.permute.xlu0 %311
    %313 = vrot.lane.b32.xlu0 %v267, 125
    %v314 = vpop.permute.xlu0 %313
    %315 = vrot.lane.b32.xlu0 %v268, 125
    %v316 = vpop.permute.xlu0 %315
    %325 = vrot.lane.b32.xlu0 %v217, 126
    %v326 = vpop.permute.xlu0 %325
    %327 = vrot.lane.b32.xlu0 %v218, 126
    %v328 = vpop.permute.xlu0 %327
    %329 = vrot.lane.b32.xlu0 %v219, 126
    %v330 = vpop.permute.xlu0 %329
    %331 = vrot.lane.b32.xlu0 %v220, 126
    %v332 = vpop.permute.xlu0 %331
    %333 = vrot.lane.b32.xlu0 %v265, 126
    %v334 = vpop.permute.xlu0 %333
    %335 = vrot.lane.b32.xlu0 %v266, 126
    %v336 = vpop.permute.xlu0 %335
    %337 = vrot.lane.b32.xlu0 %v267, 126
    %v338 = vpop.permute.xlu0 %337
    %339 = vrot.lane.b32.xlu0 %v268, 126
    %v340 = vpop.permute.xlu0 %339
    %349 = vrot.lane.b32.xlu0 %v217, 127
    %v350 = vpop.permute.xlu0 %349
    %351 = vrot.lane.b32.xlu0 %v218, 127
    %v352 = vpop.permute.xlu0 %351
    %353 = vrot.lane.b32.xlu0 %v219, 127
    %v354 = vpop.permute.xlu0 %353
    %355 = vrot.lane.b32.xlu0 %v220, 127
    %v356 = vpop.permute.xlu0 %355
    %357 = vrot.lane.b32.xlu0 %v265, 127
    %v358 = vpop.permute.xlu0 %357
    %359 = vrot.lane.b32.xlu0 %v266, 127
    %v360 = vpop.permute.xlu0 %359
    %361 = vrot.lane.b32.xlu0 %v267, 127
    %v362 = vpop.permute.xlu0 %361
    %363 = vrot.lane.b32.xlu0 %v268, 127
    %v364 = vpop.permute.xlu0 %363
    %373 = vrot.lane.b32.xlu0 %v217, 1
    %v374 = vpop.permute.xlu0 %373
    %375 = vrot.lane.b32.xlu0 %v218, 1
    %v376 = vpop.permute.xlu0 %375
    %377 = vrot.lane.b32.xlu0 %v219, 1
    %v378 = vpop.permute.xlu0 %377
    %379 = vrot.lane.b32.xlu0 %v220, 1
    %v380 = vpop.permute.xlu0 %379
    %381 = vrot.lane.b32.xlu0 %v265, 1
    %v382 = vpop.permute.xlu0 %381
    %383 = vrot.lane.b32.xlu0 %v266, 1
    %v384 = vpop.permute.xlu0 %383
    %385 = vrot.lane.b32.xlu0 %v267, 1
    %v386 = vpop.permute.xlu0 %385
    %387 = vrot.lane.b32.xlu0 %v268, 1
    %v388 = vpop.permute.xlu0 %387
    %397 = vrot.lane.b32.xlu0 %v217, 2
    %v398 = vpop.permute.xlu0 %397
    %399 = vrot.lane.b32.xlu0 %v218, 2
    %v400 = vpop.permute.xlu0 %399
    %401 = vrot.lane.b32.xlu0 %v219, 2
    %v402 = vpop.permute.xlu0 %401
    %403 = vrot.lane.b32.xlu0 %v220, 2
    %v404 = vpop.permute.xlu0 %403
    %405 = vrot.lane.b32.xlu0 %v265, 2
    %v406 = vpop.permute.xlu0 %405
    %407 = vrot.lane.b32.xlu0 %v266, 2
    %v408 = vpop.permute.xlu0 %407
    %409 = vrot.lane.b32.xlu0 %v267, 2
    %v410 = vpop.permute.xlu0 %409
    %411 = vrot.lane.b32.xlu0 %v268, 2
    %v412 = vpop.permute.xlu0 %411
    %421 = vrot.lane.b32.xlu0 %v217, 3
    %v422 = vpop.permute.xlu0 %421
    %423 = vrot.lane.b32.xlu0 %v218, 3
    %v424 = vpop.permute.xlu0 %423
    %425 = vrot.lane.b32.xlu0 %v219, 3
    %v426 = vpop.permute.xlu0 %425
    %427 = vrot.lane.b32.xlu0 %v220, 3
    %v428 = vpop.permute.xlu0 %427
    %429 = vrot.lane.b32.xlu0 %v265, 3
    %v430 = vpop.permute.xlu0 %429
    %431 = vrot.lane.b32.xlu0 %v266, 3
    %v432 = vpop.permute.xlu0 %431
    %433 = vrot.lane.b32.xlu0 %v267, 3
    %v434 = vpop.permute.xlu0 %433
    %435 = vrot.lane.b32.xlu0 %v268, 3
    %v436 = vpop.permute.xlu0 %435
    %445 = vrot.lane.b32.xlu0 %v217, 4
    %v446 = vpop.permute.xlu0 %445
    %447 = vrot.lane.b32.xlu0 %v218, 4
    %v448 = vpop.permute.xlu0 %447
    %449 = vrot.lane.b32.xlu0 %v219, 4
    %v450 = vpop.permute.xlu0 %449
    %451 = vrot.lane.b32.xlu0 %v220, 4
    %v452 = vpop.permute.xlu0 %451
    %453 = vrot.lane.b32.xlu0 %v265, 4
    %v454 = vpop.permute.xlu0 %453
    %455 = vrot.lane.b32.xlu0 %v266, 4
    %v456 = vpop.permute.xlu0 %455
    %457 = vrot.lane.b32.xlu0 %v267, 4
    %v458 = vpop.permute.xlu0 %457
    %459 = vrot.lane.b32.xlu0 %v268, 4
    %v460 = vpop.permute.xlu0 %459
    %vm469 = vcmask 7168
    %v470 = vsel %vm469, %v278, %v302
    %v471 = vsel %vm469, %v280, %v304
    %v472 = vsel %vm469, %v282, %v306
    %v473 = vsel %vm469, %v284, %v308
    %v474 = vsel %vm469, %v286, %v310
    %v475 = vsel %vm469, %v288, %v312
    %v476 = vsel %vm469, %v290, %v314
    %v477 = vsel %vm469, %v292, %v316
    %vm478 = vcmask 56320
    %v479 = vsel %vm478, %v470, %v326
    %v480 = vsel %vm478, %v471, %v328
    %v481 = vsel %vm478, %v472, %v330
    %v482 = vsel %vm478, %v473, %v332
    %v483 = vsel %vm478, %v474, %v334
    %v484 = vsel %vm478, %v475, %v336
    %v485 = vsel %vm478, %v476, %v338
    %v486 = vsel %vm478, %v477, %v340
    %vm487 = vcmask 113664
    %v488 = vsel %vm487, %v479, %v350
    %v489 = vsel %vm487, %v480, %v352
    %v490 = vsel %vm487, %v481, %v354
    %v491 = vsel %vm487, %v482, %v356
    %v492 = vsel %vm487, %v483, %v358
    %v493 = vsel %vm487, %v484, %v360
    %v494 = vsel %vm487, %v485, %v362
    %v495 = vsel %vm487, %v486, %v364
    %vm496 = vcmask 162816
    %v497 = vsel %vm496, %v488, %v217
    %v498 = vsel %vm496, %v489, %v218
    %v499 = vsel %vm496, %v490, %v219
    %v500 = vsel %vm496, %v491, %v220
    %v501 = vsel %vm496, %v492, %v265
    %v502 = vsel %vm496, %v493, %v266
    %v503 = vsel %vm496, %v494, %v267
    %v504 = vsel %vm496, %v495, %v268
    %vm505 = vcmask 220160
    %v506 = vsel %vm505, %v497, %v374
    %v507 = vsel %vm505, %v498, %v376
    %v508 = vsel %vm505, %v499, %v378
    %v509 = vsel %vm505, %v500, %v380
    %v510 = vsel %vm505, %v501, %v382
    %v511 = vsel %vm505, %v502, %v384
    %v512 = vsel %vm505, %v503, %v386
    %v513 = vsel %vm505, %v504, %v388
    %vm514 = vcmask 269312
    %v515 = vsel %vm514, %v506, %v398
    %v516 = vsel %vm514, %v507, %v400
    %v517 = vsel %vm514, %v508, %v402
    %v518 = vsel %vm514, %v509, %v404
    %v519 = vsel %vm514, %v510, %v406
    %v520 = vsel %vm514, %v511, %v408
    %v521 = vsel %vm514, %v512, %v410
    %v522 = vsel %vm514, %v513, %v412
    %vm523 = vcmask 326656
    %v524 = vsel %vm523, %v515, %v422
    %v525 = vsel %vm523, %v516, %v424
    %v526 = vsel %vm523, %v517, %v426
    %v527 = vsel %vm523, %v518, %v428
    %v528 = vsel %vm523, %v519, %v430
    %v529 = vsel %vm523, %v520, %v432
    %v530 = vsel %vm523, %v521, %v434
    %v531 = vsel %vm523, %v522, %v436
    %vm532 = vcmask 375808
    %v533 = vsel %vm532, %v524, %v446
    %v534 = vsel %vm532, %v525, %v448
    %v535 = vsel %vm532, %v526, %v450
    %v536 = vsel %vm532, %v527, %v452
    %v537 = vsel %vm532, %v528, %v454
    %v538 = vsel %vm532, %v529, %v456
    %v539 = vsel %vm532, %v530, %v458
    %v540 = vsel %vm532, %v531, %v460
    %541 = vrot.lane.b32.xlu0 %v217, 11
    %v542 = vpop.permute.xlu0 %541
    %543 = vrot.lane.b32.xlu0 %v218, 11
    %v544 = vpop.permute.xlu0 %543
    %545 = vrot.lane.b32.xlu0 %v219, 11
    %v546 = vpop.permute.xlu0 %545
    %547 = vrot.lane.b32.xlu0 %v220, 11
    %v548 = vpop.permute.xlu0 %547
    %549 = vrot.lane.b32.xlu0 %v265, 11
    %v550 = vpop.permute.xlu0 %549
    %551 = vrot.lane.b32.xlu0 %v266, 11
    %v552 = vpop.permute.xlu0 %551
    %553 = vrot.lane.b32.xlu0 %v267, 11
    %v554 = vpop.permute.xlu0 %553
    %555 = vrot.lane.b32.xlu0 %v268, 11
    %v556 = vpop.permute.xlu0 %555
    %vm565 = vcmask 121856
    %v566 = vsel %vm565, 0.0, %v542
    %v567 = vsel %vm565, 0.0, %v544
    %v568 = vsel %vm565, 0.0, %v546
    %v569 = vsel %vm565, 0.0, %v548
    %v570 = vsel %vm565, 0.0, %v550
    %v571 = vsel %vm565, 0.0, %v552
    %v572 = vsel %vm565, 0.0, %v554
    %v573 = vsel %vm565, 0.0, %v556
    %vm574 = vcmask 482304
    %v575 = vsel %vm574, %v566, 0.0
    %v576 = vsel %vm574, %v567, 0.0
    %v577 = vsel %vm574, %v568, 0.0
    %v578 = vsel %vm574, %v569, 0.0
    %v579 = vsel %vm574, %v570, 0.0
    %v580 = vsel %vm574, %v571, 0.0
    %v581 = vsel %vm574, %v572, 0.0
    %v582 = vsel %vm574, %v573, 0.0
    %v583 = vld [vmem:[#allocation2] sm:$0x1]
    %vm584 = vcmp.eq.s32.totalorder %v583, 1
    %v585 = vsel %vm584, 1, 0
    %v586 = vperm.slane %v585, 0
    %vm587 = vcmp.eq.s32.totalorder %v586, 1
    %596 = vrot.lane.b32.xlu0 %v575, 114
    %v597 = vpop.permute.xlu0 %596
    %598 = vrot.lane.b32.xlu0 %v576, 114
    %v599 = vpop.permute.xlu0 %598
    %600 = vrot.lane.b32.xlu0 %v577, 114
    %v601 = vpop.permute.xlu0 %600
    %602 = vrot.lane.b32.xlu0 %v578, 114
    %v603 = vpop.permute.xlu0 %602
    %604 = vrot.lane.b32.xlu0 %v579, 114
    %v605 = vpop.permute.xlu0 %604
    %606 = vrot.lane.b32.xlu0 %v580, 114
    %v607 = vpop.permute.xlu0 %606
    %608 = vrot.lane.b32.xlu0 %v581, 114
    %v609 = vpop.permute.xlu0 %608
    %610 = vrot.lane.b32.xlu0 %v582, 114
    %v611 = vpop.permute.xlu0 %610
    %620 = vrot.lane.b32.xlu0 %v575, 113
    %v621 = vpop.permute.xlu0 %620
    %622 = vrot.lane.b32.xlu0 %v576, 113
    %v623 = vpop.permute.xlu0 %622
    %624 = vrot.lane.b32.xlu0 %v577, 113
    %v625 = vpop.permute.xlu0 %624
    %626 = vrot.lane.b32.xlu0 %v578, 113
    %v627 = vpop.permute.xlu0 %626
    %628 = vrot.lane.b32.xlu0 %v579, 113
    %v629 = vpop.permute.xlu0 %628
    %630 = vrot.lane.b32.xlu0 %v580, 113
    %v631 = vpop.permute.xlu0 %630
    %632 = vrot.lane.b32.xlu0 %v581, 113
    %v633 = vpop.permute.xlu0 %632
    %634 = vrot.lane.b32.xlu0 %v582, 113
    %v635 = vpop.permute.xlu0 %634
    %v644 = vsel %vm587, %v597, %v621
    %v645 = vsel %vm587, %v599, %v623
    %v646 = vsel %vm587, %v601, %v625
    %v647 = vsel %vm587, %v603, %v627
    %v648 = vsel %vm587, %v605, %v629
    %v649 = vsel %vm587, %v607, %v631
    %v650 = vsel %vm587, %v609, %v633
    %v651 = vsel %vm587, %v611, %v635
    %vm652 = vcmp.eq.s32.totalorder %v583, 2
    %v653 = vsel %vm652, 1, 0
    %v654 = vperm.slane %v653, 0
    %vm655 = vcmp.eq.s32.totalorder %v654, 1
    %656 = vrot.lane.b32.xlu0 %v575, 115
    %v657 = vpop.permute.xlu0 %656
    %658 = vrot.lane.b32.xlu0 %v576, 115
    %v659 = vpop.permute.xlu0 %658
    %660 = vrot.lane.b32.xlu0 %v577, 115
    %v661 = vpop.permute.xlu0 %660
    %662 = vrot.lane.b32.xlu0 %v578, 115
    %v663 = vpop.permute.xlu0 %662
    %664 = vrot.lane.b32.xlu0 %v579, 115
    %v665 = vpop.permute.xlu0 %664
    %666 = vrot.lane.b32.xlu0 %v580, 115
    %v667 = vpop.permute.xlu0 %666
    %668 = vrot.lane.b32.xlu0 %v581, 115
    %v669 = vpop.permute.xlu0 %668
    %670 = vrot.lane.b32.xlu0 %v582, 115
    %v671 = vpop.permute.xlu0 %670
    %v680 = vsel %vm655, %v657, %v644
    %v681 = vsel %vm655, %v659, %v645
    %v682 = vsel %vm655, %v661, %v646
    %v683 = vsel %vm655, %v663, %v647
    %v684 = vsel %vm655, %v665, %v648
    %v685 = vsel %vm655, %v667, %v649
    %v686 = vsel %vm655, %v669, %v650
    %v687 = vsel %vm655, %v671, %v651
    %vm688 = vcmp.eq.s32.totalorder %v583, 3
    %v689 = vsel %vm688, 1, 0
    %v690 = vperm.slane %v689, 0
    %vm691 = vcmp.eq.s32.totalorder %v690, 1
    %692 = vrot.lane.b32.xlu0 %v575, 116
    %v693 = vpop.permute.xlu0 %692
    %694 = vrot.lane.b32.xlu0 %v576, 116
    %v695 = vpop.permute.xlu0 %694
    %696 = vrot.lane.b32.xlu0 %v577, 116
    %v697 = vpop.permute.xlu0 %696
    %698 = vrot.lane.b32.xlu0 %v578, 116
    %v699 = vpop.permute.xlu0 %698
    %700 = vrot.lane.b32.xlu0 %v579, 116
    %v701 = vpop.permute.xlu0 %700
    %702 = vrot.lane.b32.xlu0 %v580, 116
    %v703 = vpop.permute.xlu0 %702
    %704 = vrot.lane.b32.xlu0 %v581, 116
    %v705 = vpop.permute.xlu0 %704
    %706 = vrot.lane.b32.xlu0 %v582, 116
    %v707 = vpop.permute.xlu0 %706
    %v716 = vsel %vm691, %v693, %v680
    %v717 = vsel %vm691, %v695, %v681
    %v718 = vsel %vm691, %v697, %v682
    %v719 = vsel %vm691, %v699, %v683
    %v720 = vsel %vm691, %v701, %v684
    %v721 = vsel %vm691, %v703, %v685
    %v722 = vsel %vm691, %v705, %v686
    %v723 = vsel %vm691, %v707, %v687
    %vm724 = vcmp.eq.s32.totalorder %v583, 4
    %v725 = vsel %vm724, 1, 0
    %v726 = vperm.slane %v725, 0
    %vm727 = vcmp.eq.s32.totalorder %v726, 1
    %728 = vrot.lane.b32.xlu0 %v575, 117
    %v729 = vpop.permute.xlu0 %728
    %730 = vrot.lane.b32.xlu0 %v576, 117
    %v731 = vpop.permute.xlu0 %730
    %732 = vrot.lane.b32.xlu0 %v577, 117
    %v733 = vpop.permute.xlu0 %732
    %734 = vrot.lane.b32.xlu0 %v578, 117
    %v735 = vpop.permute.xlu0 %734
    %736 = vrot.lane.b32.xlu0 %v579, 117
    %v737 = vpop.permute.xlu0 %736
    %738 = vrot.lane.b32.xlu0 %v580, 117
    %v739 = vpop.permute.xlu0 %738
    %740 = vrot.lane.b32.xlu0 %v581, 117
    %v741 = vpop.permute.xlu0 %740
    %742 = vrot.lane.b32.xlu0 %v582, 117
    %v743 = vpop.permute.xlu0 %742
    %v752 = vsel %vm727, %v729, %v716
    %v753 = vsel %vm727, %v731, %v717
    %v754 = vsel %vm727, %v733, %v718
    %v755 = vsel %vm727, %v735, %v719
    %v756 = vsel %vm727, %v737, %v720
    %v757 = vsel %vm727, %v739, %v721
    %v758 = vsel %vm727, %v741, %v722
    %v759 = vsel %vm727, %v743, %v723
    %vm760 = vcmp.eq.s32.totalorder %v583, 5
    %v761 = vsel %vm760, 1, 0
    %v762 = vperm.slane %v761, 0
    %vm763 = vcmp.eq.s32.totalorder %v762, 1
    %764 = vrot.lane.b32.xlu0 %v575, 118
    %v765 = vpop.permute.xlu0 %764
    %766 = vrot.lane.b32.xlu0 %v576, 118
    %v767 = vpop.permute.xlu0 %766
    %768 = vrot.lane.b32.xlu0 %v577, 118
    %v769 = vpop.permute.xlu0 %768
    %770 = vrot.lane.b32.xlu0 %v578, 118
    %v771 = vpop.permute.xlu0 %770
    %772 = vrot.lane.b32.xlu0 %v579, 118
    %v773 = vpop.permute.xlu0 %772
    %774 = vrot.lane.b32.xlu0 %v580, 118
    %v775 = vpop.permute.xlu0 %774
    %776 = vrot.lane.b32.xlu0 %v581, 118
    %v777 = vpop.permute.xlu0 %776
    %778 = vrot.lane.b32.xlu0 %v582, 118
    %v779 = vpop.permute.xlu0 %778
    %v788 = vsel %vm763, %v765, %v752
    %v789 = vsel %vm763, %v767, %v753
    %v790 = vsel %vm763, %v769, %v754
    %v791 = vsel %vm763, %v771, %v755
    %v792 = vsel %vm763, %v773, %v756
    %v793 = vsel %vm763, %v775, %v757
    %v794 = vsel %vm763, %v777, %v758
    %v795 = vsel %vm763, %v779, %v759
    %vm796 = vcmp.eq.s32.totalorder %v583, 6
    %v797 = vsel %vm796, 1, 0
    %v798 = vperm.slane %v797, 0
    %vm799 = vcmp.eq.s32.totalorder %v798, 1
    %800 = vrot.lane.b32.xlu0 %v575, 119
    %v801 = vpop.permute.xlu0 %800
    %802 = vrot.lane.b32.xlu0 %v576, 119
    %v803 = vpop.permute.xlu0 %802
    %804 = vrot.lane.b32.xlu0 %v577, 119
    %v805 = vpop.permute.xlu0 %804
    %806 = vrot.lane.b32.xlu0 %v578, 119
    %v807 = vpop.permute.xlu0 %806
    %808 = vrot.lane.b32.xlu0 %v579, 119
    %v809 = vpop.permute.xlu0 %808
    %810 = vrot.lane.b32.xlu0 %v580, 119
    %v811 = vpop.permute.xlu0 %810
    %812 = vrot.lane.b32.xlu0 %v581, 119
    %v813 = vpop.permute.xlu0 %812
    %814 = vrot.lane.b32.xlu0 %v582, 119
    %v815 = vpop.permute.xlu0 %814
    %v824 = vsel %vm799, %v801, %v788
    %v825 = vsel %vm799, %v803, %v789
    %v826 = vsel %vm799, %v805, %v790
    %v827 = vsel %vm799, %v807, %v791
    %v828 = vsel %vm799, %v809, %v792
    %v829 = vsel %vm799, %v811, %v793
    %v830 = vsel %vm799, %v813, %v794
    %v831 = vsel %vm799, %v815, %v795
    %vm832 = vcmp.eq.s32.totalorder %v583, 7
    %v833 = vsel %vm832, 1, 0
    %v834 = vperm.slane %v833, 0
    %vm835 = vcmp.eq.s32.totalorder %v834, 1
    %836 = vrot.lane.b32.xlu0 %v575, 120
    %v837 = vpop.permute.xlu0 %836
    %838 = vrot.lane.b32.xlu0 %v576, 120
    %v839 = vpop.permute.xlu0 %838
    %840 = vrot.lane.b32.xlu0 %v577, 120
    %v841 = vpop.permute.xlu0 %840
    %842 = vrot.lane.b32.xlu0 %v578, 120
    %v843 = vpop.permute.xlu0 %842
    %844 = vrot.lane.b32.xlu0 %v579, 120
    %v845 = vpop.permute.xlu0 %844
    %846 = vrot.lane.b32.xlu0 %v580, 120
    %v847 = vpop.permute.xlu0 %846
    %848 = vrot.lane.b32.xlu0 %v581, 120
    %v849 = vpop.permute.xlu0 %848
    %850 = vrot.lane.b32.xlu0 %v582, 120
    %v851 = vpop.permute.xlu0 %850
    %v860 = vsel %vm835, %v837, %v824
    %v861 = vsel %vm835, %v839, %v825
    %v862 = vsel %vm835, %v841, %v826
    %v863 = vsel %vm835, %v843, %v827
    %v864 = vsel %vm835, %v845, %v828
    %v865 = vsel %vm835, %v847, %v829
    %v866 = vsel %vm835, %v849, %v830
    %v867 = vsel %vm835, %v851, %v831
    %vm868 = vcmp.eq.s32.totalorder %v583, 8
    %v869 = vsel %vm868, 1, 0
    %v870 = vperm.slane %v869, 0
    %vm871 = vcmp.eq.s32.totalorder %v870, 1
    %872 = vrot.lane.b32.xlu0 %v575, 121
    %v873 = vpop.permute.xlu0 %872
    %874 = vrot.lane.b32.xlu0 %v576, 121
    %v875 = vpop.permute.xlu0 %874
    %876 = vrot.lane.b32.xlu0 %v577, 121
    %v877 = vpop.permute.xlu0 %876
    %878 = vrot.lane.b32.xlu0 %v578, 121
    %v879 = vpop.permute.xlu0 %878
    %880 = vrot.lane.b32.xlu0 %v579, 121
    %v881 = vpop.permute.xlu0 %880
    %882 = vrot.lane.b32.xlu0 %v580, 121
    %v883 = vpop.permute.xlu0 %882
    %884 = vrot.lane.b32.xlu0 %v581, 121
    %v885 = vpop.permute.xlu0 %884
    %886 = vrot.lane.b32.xlu0 %v582, 121
    %v887 = vpop.permute.xlu0 %886
    %v896 = vsel %vm871, %v873, %v860
    %v897 = vsel %vm871, %v875, %v861
    %v898 = vsel %vm871, %v877, %v862
    %v899 = vsel %vm871, %v879, %v863
    %v900 = vsel %vm871, %v881, %v864
    %v901 = vsel %vm871, %v883, %v865
    %v902 = vsel %vm871, %v885, %v866
    %v903 = vsel %vm871, %v887, %v867
    %vm904 = vcmp.eq.s32.totalorder %v583, 9
    %v905 = vsel %vm904, 1, 0
    %v906 = vperm.slane %v905, 0
    %vm907 = vcmp.eq.s32.totalorder %v906, 1
    %908 = vrot.lane.b32.xlu0 %v575, 122
    %v909 = vpop.permute.xlu0 %908
    %910 = vrot.lane.b32.xlu0 %v576, 122
    %v911 = vpop.permute.xlu0 %910
    %912 = vrot.lane.b32.xlu0 %v577, 122
    %v913 = vpop.permute.xlu0 %912
    %914 = vrot.lane.b32.xlu0 %v578, 122
    %v915 = vpop.permute.xlu0 %914
    %916 = vrot.lane.b32.xlu0 %v579, 122
    %v917 = vpop.permute.xlu0 %916
    %918 = vrot.lane.b32.xlu0 %v580, 122
    %v919 = vpop.permute.xlu0 %918
    %920 = vrot.lane.b32.xlu0 %v581, 122
    %v921 = vpop.permute.xlu0 %920
    %922 = vrot.lane.b32.xlu0 %v582, 122
    %v923 = vpop.permute.xlu0 %922
    %v932 = vsel %vm907, %v909, %v896
    %v933 = vsel %vm907, %v911, %v897
    %v934 = vsel %vm907, %v913, %v898
    %v935 = vsel %vm907, %v915, %v899
    %v936 = vsel %vm907, %v917, %v900
    %v937 = vsel %vm907, %v919, %v901
    %v938 = vsel %vm907, %v921, %v902
    %v939 = vsel %vm907, %v923, %v903
    %vm940 = vcmp.eq.s32.totalorder %v583, 10
    %v941 = vsel %vm940, 1, 0
    %v942 = vperm.slane %v941, 0
    %vm943 = vcmp.eq.s32.totalorder %v942, 1
    %944 = vrot.lane.b32.xlu0 %v575, 123
    %v945 = vpop.permute.xlu0 %944
    %946 = vrot.lane.b32.xlu0 %v576, 123
    %v947 = vpop.permute.xlu0 %946
    %948 = vrot.lane.b32.xlu0 %v577, 123
    %v949 = vpop.permute.xlu0 %948
    %950 = vrot.lane.b32.xlu0 %v578, 123
    %v951 = vpop.permute.xlu0 %950
    %952 = vrot.lane.b32.xlu0 %v579, 123
    %v953 = vpop.permute.xlu0 %952
    %954 = vrot.lane.b32.xlu0 %v580, 123
    %v955 = vpop.permute.xlu0 %954
    %956 = vrot.lane.b32.xlu0 %v581, 123
    %v957 = vpop.permute.xlu0 %956
    %958 = vrot.lane.b32.xlu0 %v582, 123
    %v959 = vpop.permute.xlu0 %958
    %v968 = vsel %vm943, %v945, %v932
    %v969 = vsel %vm943, %v947, %v933
    %v970 = vsel %vm943, %v949, %v934
    %v971 = vsel %vm943, %v951, %v935
    %v972 = vsel %vm943, %v953, %v936
    %v973 = vsel %vm943, %v955, %v937
    %v974 = vsel %vm943, %v957, %v938
    %v975 = vsel %vm943, %v959, %v939
    %vm976 = vcmp.eq.s32.totalorder %v583, 11
    %v977 = vsel %vm976, 1, 0
    %v978 = vperm.slane %v977, 0
    %vm979 = vcmp.eq.s32.totalorder %v978, 1
    %980 = vrot.lane.b32.xlu0 %v575, 124
    %v981 = vpop.permute.xlu0 %980
    %982 = vrot.lane.b32.xlu0 %v576, 124
    %v983 = vpop.permute.xlu0 %982
    %984 = vrot.lane.b32.xlu0 %v577, 124
    %v985 = vpop.permute.xlu0 %984
    %986 = vrot.lane.b32.xlu0 %v578, 124
    %v987 = vpop.permute.xlu0 %986
    %988 = vrot.lane.b32.xlu0 %v579, 124
    %v989 = vpop.permute.xlu0 %988
    %990 = vrot.lane.b32.xlu0 %v580, 124
    %v991 = vpop.permute.xlu0 %990
    %992 = vrot.lane.b32.xlu0 %v581, 124
    %v993 = vpop.permute.xlu0 %992
    %994 = vrot.lane.b32.xlu0 %v582, 124
    %v995 = vpop.permute.xlu0 %994
    %v1004 = vsel %vm979, %v981, %v968
    %v1005 = vsel %vm979, %v983, %v969
    %v1006 = vsel %vm979, %v985, %v970
    %v1007 = vsel %vm979, %v987, %v971
    %v1008 = vsel %vm979, %v989, %v972
    %v1009 = vsel %vm979, %v991, %v973
    %v1010 = vsel %vm979, %v993, %v974
    %v1011 = vsel %vm979, %v995, %v975
    %vm1012 = vcmp.eq.s32.totalorder %v583, 12
    %v1013 = vsel %vm1012, 1, 0
    %v1014 = vperm.slane %v1013, 0
    %vm1015 = vcmp.eq.s32.totalorder %v1014, 1
    %1016 = vrot.lane.b32.xlu0 %v575, 125
    %v1017 = vpop.permute.xlu0 %1016
    %1018 = vrot.lane.b32.xlu0 %v576, 125
    %v1019 = vpop.permute.xlu0 %1018
    %1020 = vrot.lane.b32.xlu0 %v577, 125
    %v1021 = vpop.permute.xlu0 %1020
    %1022 = vrot.lane.b32.xlu0 %v578, 125
    %v1023 = vpop.permute.xlu0 %1022
    %1024 = vrot.lane.b32.xlu0 %v579, 125
    %v1025 = vpop.permute.xlu0 %1024
    %1026 = vrot.lane.b32.xlu0 %v580, 125
    %v1027 = vpop.permute.xlu0 %1026
    %1028 = vrot.lane.b32.xlu0 %v581, 125
    %v1029 = vpop.permute.xlu0 %1028
    %1030 = vrot.lane.b32.xlu0 %v582, 125
    %v1031 = vpop.permute.xlu0 %1030
    %v1040 = vsel %vm1015, %v1017, %v1004
    %v1041 = vsel %vm1015, %v1019, %v1005
    %v1042 = vsel %vm1015, %v1021, %v1006
    %v1043 = vsel %vm1015, %v1023, %v1007
    %v1044 = vsel %vm1015, %v1025, %v1008
    %v1045 = vsel %vm1015, %v1027, %v1009
    %v1046 = vsel %vm1015, %v1029, %v1010
    %v1047 = vsel %vm1015, %v1031, %v1011
    %vm1048 = vcmp.eq.s32.totalorder %v583, 13
    %v1049 = vsel %vm1048, 1, 0
    %v1050 = vperm.slane %v1049, 0
    %vm1051 = vcmp.eq.s32.totalorder %v1050, 1
    %1052 = vrot.lane.b32.xlu0 %v575, 126
    %v1053 = vpop.permute.xlu0 %1052
    %1054 = vrot.lane.b32.xlu0 %v576, 126
    %v1055 = vpop.permute.xlu0 %1054
    %1056 = vrot.lane.b32.xlu0 %v577, 126
    %v1057 = vpop.permute.xlu0 %1056
    %1058 = vrot.lane.b32.xlu0 %v578, 126
    %v1059 = vpop.permute.xlu0 %1058
    %1060 = vrot.lane.b32.xlu0 %v579, 126
    %v1061 = vpop.permute.xlu0 %1060
    %1062 = vrot.lane.b32.xlu0 %v580, 126
    %v1063 = vpop.permute.xlu0 %1062
    %1064 = vrot.lane.b32.xlu0 %v581, 126
    %v1065 = vpop.permute.xlu0 %1064
    %1066 = vrot.lane.b32.xlu0 %v582, 126
    %v1067 = vpop.permute.xlu0 %1066
    %v1076 = vsel %vm1051, %v1053, %v1040
    %v1077 = vsel %vm1051, %v1055, %v1041
    %v1078 = vsel %vm1051, %v1057, %v1042
    %v1079 = vsel %vm1051, %v1059, %v1043
    %v1080 = vsel %vm1051, %v1061, %v1044
    %v1081 = vsel %vm1051, %v1063, %v1045
    %v1082 = vsel %vm1051, %v1065, %v1046
    %v1083 = vsel %vm1051, %v1067, %v1047
    %vm1084 = vcmp.eq.s32.totalorder %v583, 14
    %v1085 = vsel %vm1084, 1, 0
    %v1086 = vperm.slane %v1085, 0
    %vm1087 = vcmp.eq.s32.totalorder %v1086, 1
    %1088 = vrot.lane.b32.xlu0 %v575, 127
    %v1089 = vpop.permute.xlu0 %1088
    %1090 = vrot.lane.b32.xlu0 %v576, 127
    %v1091 = vpop.permute.xlu0 %1090
    %1092 = vrot.lane.b32.xlu0 %v577, 127
    %v1093 = vpop.permute.xlu0 %1092
    %1094 = vrot.lane.b32.xlu0 %v578, 127
    %v1095 = vpop.permute.xlu0 %1094
    %1096 = vrot.lane.b32.xlu0 %v579, 127
    %v1097 = vpop.permute.xlu0 %1096
    %1098 = vrot.lane.b32.xlu0 %v580, 127
    %v1099 = vpop.permute.xlu0 %1098
    %1100 = vrot.lane.b32.xlu0 %v581, 127
    %v1101 = vpop.permute.xlu0 %1100
    %1102 = vrot.lane.b32.xlu0 %v582, 127
    %v1103 = vpop.permute.xlu0 %1102
    %v1112 = vsel %vm1087, %v1089, %v1076
    %v1113 = vsel %vm1087, %v1091, %v1077
    %v1114 = vsel %vm1087, %v1093, %v1078
    %v1115 = vsel %vm1087, %v1095, %v1079
    %v1116 = vsel %vm1087, %v1097, %v1080
    %v1117 = vsel %vm1087, %v1099, %v1081
    %v1118 = vsel %vm1087, %v1101, %v1082
    %v1119 = vsel %vm1087, %v1103, %v1083
    %vm1120 = vcmp.eq.s32.totalorder %v583, 15
    %v1121 = vsel %vm1120, 1, 0
    %v1122 = vperm.slane %v1121, 0
    %vm1123 = vcmp.eq.s32.totalorder %v1122, 1
    %v1124 = vsel %vm1123, %v575, %v1112
    %v1125 = vsel %vm1123, %v576, %v1113
    %v1126 = vsel %vm1123, %v577, %v1114
    %v1127 = vsel %vm1123, %v578, %v1115
    %v1128 = vsel %vm1123, %v579, %v1116
    %v1129 = vsel %vm1123, %v580, %v1117
    %v1130 = vsel %vm1123, %v581, %v1118
    %v1131 = vsel %vm1123, %v582, %v1119
    %1132 = vrot.lane.b32.xlu0 %v137, 124
    %v1133 = vpop.permute.xlu0 %1132
    %1134 = vrot.lane.b32.xlu0 %v138, 124
    %v1135 = vpop.permute.xlu0 %1134
    %1136 = vrot.lane.b32.xlu0 %v139, 124
    %v1137 = vpop.permute.xlu0 %1136
    %1138 = vrot.lane.b32.xlu0 %v140, 124
    %v1139 = vpop.permute.xlu0 %1138
    %v1144 = vadd.f32 %v533, %v1133
    %v1145 = vadd.f32 %v534, %v1135
    %v1146 = vadd.f32 %v535, %v1137
    %v1147 = vadd.f32 %v536, %v1139
    %vm1148 = vcmask 424960
    %1149 = vst.msk [vmem:[#allocation7] sm:$0xff] %vm1148, %v1144
    %1150 = vst.msk [vmem:[#allocation7 + $0x8] sm:$0xff] %vm1148, %v1145
    %1151 = vst.msk [vmem:[#allocation7 + $0x10] sm:$0xff] %vm1148, %v1146
    %1152 = vst.msk [vmem:[#allocation7 + $0x18] sm:$0xff] %vm1148, %v1147
    %v1153 = vadd.f32 %v1124, %v1133
    %v1154 = vadd.f32 %v1125, %v1135
    %v1155 = vadd.f32 %v1126, %v1137
    %v1156 = vadd.f32 %v1127, %v1139
    %s1157 = scalar_lea.vmem [#allocation7], 32
    %1158 = vst.msk [vmem:[%s1157] sm:$0xff] %vm1148, %v1153
    %1159 = vst.msk [vmem:[%s1157 + $0x8] sm:$0xff] %vm1148, %v1154
    %1160 = vst.msk [vmem:[%s1157 + $0x10] sm:$0xff] %vm1148, %v1155
    %1161 = vst.msk [vmem:[%s1157 + $0x18] sm:$0xff] %vm1148, %v1156
    %v1162 = vadd.f32 %v537, %v1133
    %v1163 = vadd.f32 %v538, %v1135
    %v1164 = vadd.f32 %v539, %v1137
    %v1165 = vadd.f32 %v540, %v1139
    %s1166 = scalar_lea.vmem [#allocation7], 64
    %1167 = vst.msk [vmem:[%s1166] sm:$0xff] %vm1148, %v1162
    %1168 = vst.msk [vmem:[%s1166 + $0x8] sm:$0xff] %vm1148, %v1163
    %1169 = vst.msk [vmem:[%s1166 + $0x10] sm:$0xff] %vm1148, %v1164
    %1170 = vst.msk [vmem:[%s1166 + $0x18] sm:$0xff] %vm1148, %v1165
    %v1171 = vadd.f32 %v1128, %v1133
    %v1172 = vadd.f32 %v1129, %v1135
    %v1173 = vadd.f32 %v1130, %v1137
    %v1174 = vadd.f32 %v1131, %v1139
    %s1175 = scalar_lea.vmem [#allocation7], 96
    %1176 = vst.msk [vmem:[%s1175] sm:$0xff] %vm1148, %v1171
    %1177 = vst.msk [vmem:[%s1175 + $0x8] sm:$0xff] %vm1148, %v1172
    %1178 = vst.msk [vmem:[%s1175 + $0x10] sm:$0xff] %vm1148, %v1173
    %1179 = vst.msk [vmem:[%s1175 + $0x18] sm:$0xff] %vm1148, %v1174
    // Predicated region
    $region18: #{tpu_custom_call.1} parent=1 // pred_check
      _
    $region19: #{tpu_custom_call.1} parent=1 // pred_check_branch
      %1181 = sbr.rel (0) target = $region21
    $region20: #{tpu_custom_call.1} parent=1 // pred_region
      %1183 = vsyncadd [#allocation4], 0
      %s1184 = sshll.u32 [#allocation7], 4
      %s1185 = int_to_ptr.vmem [resolvable:$true] %s1184
      %s1186 = sshll.u32 %s2, 4
      %s1187 = int_to_ptr.hbm [resolvable:$true] %s1186
      %1192 = dma.vmem_to_hbm [thread:$0]  %s1185, 2048, %s1187, [#allocation4], 128, 128, 8
    $region21: #{tpu_custom_call.1} parent=1 // pred_fallthru
      _
    // Predicated region
    $region22: #{tpu_custom_call.1} parent=1 // pred_check
      _
    $region23: #{tpu_custom_call.1} parent=1 // pred_check_branch
      %1194 = sbr.rel (0) target = $region25
    $region24: #{tpu_custom_call.1} parent=1 // pred_region
      %1196 = dma.done [#allocation4], 2048
    $region25: #{tpu_custom_call.1} parent=1 // pred_fallthru
      _
    %1197 = vsyncpa [#allocation3], 1
    %1198 = vsyncpa [#allocation6], 1
    %1199 = vsyncpa [#allocation4], 1

</llo_original>
